<compile_context>
chip_gen: v7x
topology: tpu7x:2x2x1
jax: 0.10.0
libtpu: 0.0.40
codegen_flags: <defaults>
</compile_context>

<pallas_src>
import functools

import jax
import jax.numpy as jnp
import numpy as np
from jax import lax
from jax.experimental import pallas as pl
from jax.experimental.pallas import tpu as pltpu


def _round_up(x, m):
    return ((x + m - 1) // m) * m


def _cdiv(a, b):
    return -(-a // b)


def rnn_fused_kernel(u_ref, whh_ref, wfc_ref, out_ref, hlast_ref, h_carry,
                     *, t_total, masked_tail):
    """Sequential recurrence h_t = tanh(u_t + h_{t-1} @ W_hh^T) + fused FC head.

    u_ref:     (Tc, Bblk, Hp) io_dtype  precomputed x_t @ W_ih^T + (b_ih + b_hh)
    whh_ref:   (Hp, Hp)       compute_dtype  W_hh^T (loop-invariant)
    wfc_ref:   (Hp, Op)       f32       W_fc^T (loop-invariant)
    out_ref:   (Tc, Bblk, Op) f32       FC outputs (lane-dense, Op % 128 == 0)
    hlast_ref: (Bblk, Hp)     f32       final hidden state (written on last time block)
    h_carry:   (Bblk, Hp)     f32       VMEM scratch carried across time blocks
    """
    t_blk = pl.program_id(1)
    tc = u_ref.shape[0]

    @pl.when(t_blk == 0)
    def _():
        h_carry[...] = jnp.zeros_like(h_carry)

    def step(i, h_prev):
        # Recurrent matmul + tanh: the only ops on the serial critical path.
        # whh_ref is indexed inside the loop (not hoisted into a long-lived value),
        # so large weights are streamed from VMEM by the MXU rather than pinned in
        # vregs (avoids spills whose reloads would land on the serial chain).
        # TODO(synk): stage W_hh^T in the MXU across timesteps via
        # pltpu.matmul_push_rhs / matmul_acc_lhs / matmul_pop to avoid re-streaming
        # the RHS every step (per-step latency lever on v6e/v7x).
        h_new = jnp.tanh(
            u_ref[i].astype(jnp.float32)
            + jnp.dot(h_prev.astype(whh_ref.dtype), whh_ref[...],
                      preferred_element_type=jnp.float32))
        # Fused FC head: off the h dependency chain, fills otherwise-idle MXU cycles,
        # and removes the (T, B, H) hidden-state HBM round trip.
        out_ref[i] = jnp.dot(h_new.astype(wfc_ref.dtype), wfc_ref[...],
                             preferred_element_type=jnp.float32
                             ).astype(out_ref.dtype)
        if masked_tail:
            # Padded timesteps (>= T) must not advance the carried hidden state.
            h_new = jnp.where(t_blk * tc + i < t_total, h_new, h_prev)
        return h_new

    # Partial unroll: enough for scheduler visibility, bounded vreg pressure.
    h_carry[...] = lax.fori_loop(0, tc, step, h_carry[...], unroll=min(tc, 8))

    @pl.when(t_blk == pl.num_programs(1) - 1)
    def _():
        hlast_ref[...] = h_carry[...]


def simple_rnn_forward(x, params, *, block_t=32, compute_dtype=jnp.float32,
                       io_dtype=jnp.float32, num_batch_blocks=None):
    """x: (B, T, I) float32 (batch_first, like PyTorch). Returns (out, hidden)."""
    w_ih, w_hh, b_ih, b_hh, w_fc, b_fc = params
    B, T, I = x.shape
    H = w_ih.shape[0]
    O = w_fc.shape[0]
    f32 = jnp.float32

    # ---- hardware-friendly tiling -------------------------------------------------
    if num_batch_blocks is None:
        # Set to 2 on v7x (2 TensorCores/chip) when B >= 16; on single-TC chips a
        # batch split only lengthens the serial chain, so default to 1.
        num_batch_blocks = 1
    Bblk = _round_up(_cdiv(B, num_batch_blocks), 8)       # sublane multiple per block
    Bp = Bblk * num_batch_blocks
    Hp = _round_up(H, 128)                                # lane multiple
    Op = _round_up(O, 128)
    n_t = _cdiv(T, max(1, block_t))                       # balanced time chunks:
    Tc = _cdiv(T, n_t)                                    #   at most n_t-1 padded steps
    Tp = n_t * Tc

    # ---- padded operands ------------------------------------------------------------
    x_p = jnp.pad(x.astype(f32), ((0, Bp - B), (0, Tp - T), (0, 0)))      # (Bp, Tp, I)
    w_ih_p = jnp.pad(w_ih.astype(f32), ((0, Hp - H), (0, 0)))             # (Hp, I)
    b_p = jnp.pad((b_ih + b_hh).astype(f32), (0, Hp - H))                 # fused bias
    whh_t_p = jnp.pad(w_hh.astype(f32),
                      ((0, Hp - H), (0, Hp - H))).T.astype(compute_dtype)  # (Hp, Hp)
    wfc_t_p = jnp.pad(w_fc.astype(f32), ((0, Op - O), (0, Hp - H))).T      # (Hp, Op)

    # Hoisted, time-parallel input projection: one big matmul; the batch_first ->
    # time-major transpose is folded into the einsum (no standalone HBM pass).
    # Storing u in bf16 (io_dtype) halves the largest HBM intermediate (v5e/v6e win).
    u = (jnp.einsum('bti,hi->tbh', x_p, w_ih_p,
                    preferred_element_type=jnp.float32) + b_p).astype(io_dtype)

    def _weight_spec(shape, nbytes):
        # Loop-invariant weights: their index_map is constant, so double-buffering
        # only doubles VMEM. Single-buffer once large (matters under v7x's 64 MiB).
        if nbytes >= (4 << 20):
            return pl.BlockSpec(shape, lambda b, t: (0, 0),
                                pipeline_mode=pl.Buffered(1))
        return pl.BlockSpec(shape, lambda b, t: (0, 0))

    io_bytes = jnp.dtype(io_dtype).itemsize
    c_bytes = jnp.dtype(compute_dtype).itemsize
    whh_nbytes = Hp * Hp * c_bytes
    wfc_nbytes = Hp * Op * 4
    vmem_bytes = (2 * Tc * Bblk * Hp * io_bytes                 # u tile, double-buffered
                  + 2 * Tc * Bblk * Op * 4                      # out tile, double-buffered
                  + 2 * Bblk * Hp * 4                           # final-hidden tile
                  + (1 if whh_nbytes >= (4 << 20) else 2) * whh_nbytes
                  + (1 if wfc_nbytes >= (4 << 20) else 2) * wfc_nbytes
                  + Bblk * Hp * 4)                              # carry scratch
    vmem_limit = int(min(64 << 20, max(32 << 20, int(vmem_bytes * 1.5))))

    grid_spec = pltpu.PrefetchScalarGridSpec(
        num_scalar_prefetch=0,
        grid=(num_batch_blocks, n_t),
        in_specs=[
            pl.BlockSpec((Tc, Bblk, Hp), lambda b, t: (t, b, 0)),   # u block
            _weight_spec((Hp, Hp), whh_nbytes),                     # W_hh^T
            _weight_spec((Hp, Op), wfc_nbytes),                     # W_fc^T
        ],
        out_specs=[
            pl.BlockSpec((Tc, Bblk, Op), lambda b, t: (t, b, 0)),   # lane-dense output
            pl.BlockSpec((Bblk, Hp), lambda b, t: (b, 0)),          # final hidden
        ],
        scratch_shapes=[pltpu.VMEM((Bblk, Hp), jnp.float32)],
    )

    kernel = functools.partial(rnn_fused_kernel, t_total=T, masked_tail=(Tp != T))

    out_tbo, h_last = pl.pallas_call(
        kernel,
        grid_spec=grid_spec,
        out_shape=(jax.ShapeDtypeStruct((Tp, Bp, Op), jnp.float32),
                   jax.ShapeDtypeStruct((Bp, Hp), jnp.float32)),
        compiler_params=pltpu.CompilerParams(
            dimension_semantics=("parallel", "arbitrary"),  # batch parallel, time serial
            vmem_limit_bytes=vmem_limit),
    )(u, whh_t_p, wfc_t_p)

    # Un-pad, back to batch_first, add the FC bias (small (B, T, O) pass).
    out = jnp.transpose(out_tbo[:T, :B, :O], (1, 0, 2)) + b_fc.astype(f32)
    hidden = h_last[:B, :H][None, :, :]
    return out, hidden


def init_params(key, input_size, hidden_size, output_size):
    """Deterministic init mimicking PyTorch's uniform(-1/sqrt(H), 1/sqrt(H))."""
    ks = jax.random.split(key, 6)
    s = 1.0 / np.sqrt(hidden_size)
    w_ih = jax.random.uniform(ks[0], (hidden_size, input_size), jnp.float32, -s, s)
    w_hh = jax.random.uniform(ks[1], (hidden_size, hidden_size), jnp.float32, -s, s)
    b_ih = jax.random.uniform(ks[2], (hidden_size,), jnp.float32, -s, s)
    b_hh = jax.random.uniform(ks[3], (hidden_size,), jnp.float32, -s, s)
    w_fc = jax.random.uniform(ks[4], (output_size, hidden_size), jnp.float32, -s, s)
    b_fc = jax.random.uniform(ks[5], (output_size,), jnp.float32, -s, s)
    return (w_ih, w_hh, b_ih, b_hh, w_fc, b_fc)


def reference_forward(x, params):
    """Pure-JAX reference of nn.RNN(tanh, batch_first) + Linear."""
    w_ih, w_hh, b_ih, b_hh, w_fc, b_fc = params
    B, T, _ = x.shape
    H = w_ih.shape[0]
    h = jnp.zeros((B, H), jnp.float32)
    hs = []
    for t in range(T):
        h = jnp.tanh(x[:, t, :] @ w_ih.T + b_ih + h @ w_hh.T + b_hh)
        hs.append(h)
    out_h = jnp.stack(hs, axis=1)                  # (B, T, H)
    out = out_h @ w_fc.T + b_fc                    # (B, T, O)
    return out, h[None, :, :]


if __name__ == "__main__":
    # --- small shapes consistent with the module -----------------------------------
    B, T, I, H, O = 2, 8, 16, 32, 8
    key = jax.random.PRNGKey(0)
    k_x, k_p = jax.random.split(key)
    x = jax.random.normal(k_x, (B, T, I), jnp.float32)
    params = init_params(k_p, I, H, O)

    ref_out, ref_hidden = reference_forward(x, params)

    # f32 path (tight check).
    out, hidden = jax.block_until_ready(simple_rnn_forward(x, params))
    np.testing.assert_allclose(np.asarray(out), np.asarray(ref_out), rtol=1e-4, atol=1e-4)
    np.testing.assert_allclose(np.asarray(hidden), np.asarray(ref_hidden), rtol=1e-4, atol=1e-4)

    # bf16 storage of u (HBM-bandwidth path for v5e/v6e); f32 accumulation & tanh.
    out_bf, hidden_bf = jax.block_until_ready(
        simple_rnn_forward(x, params, io_dtype=jnp.bfloat16))
    np.testing.assert_allclose(np.asarray(out_bf), np.asarray(ref_out), rtol=5e-2, atol=5e-2)
    np.testing.assert_allclose(np.asarray(hidden_bf), np.asarray(ref_hidden), rtol=5e-2, atol=5e-2)

    # Larger case exercising multi-block time axis (with masked padded tail steps)
    # and the batch-parallel grid axis (v7x 2-TensorCore layout; runs fine on 1 TC).
    B2, T2, I2, H2, O2 = 16, 67, 24, 160, 24
    x2 = jax.random.normal(jax.random.PRNGKey(1), (B2, T2, I2), jnp.float32)
    params2 = init_params(jax.random.PRNGKey(2), I2, H2, O2)
    ref_out2, ref_hidden2 = reference_forward(x2, params2)
    out2, hidden2 = jax.block_until_ready(
        simple_rnn_forward(x2, params2, block_t=32, num_batch_blocks=2))
    np.testing.assert_allclose(np.asarray(out2), np.asarray(ref_out2), rtol=2e-2, atol=2e-2)
    np.testing.assert_allclose(np.asarray(hidden2), np.asarray(ref_hidden2), rtol=2e-2, atol=2e-2)

    print("KERNEL_OK")
</pallas_src>

<mosaic_0001>
module attributes {stable_mosaic.version = 11 : i64} {
  func.func @rnn_fused_kernel(%arg0: i32, %arg1: i32, %arg2: memref<8x8x128xf32, #tpu.memory_space<vmem>>, %arg3: memref<128x128xf32, #tpu.memory_space<vmem>>, %arg4: memref<128x128xf32, #tpu.memory_space<vmem>>, %arg5: memref<8x8x128xf32, #tpu.memory_space<vmem>>, %arg6: memref<8x128xf32, #tpu.memory_space<vmem>>, %arg7: memref<8x128xf32, #tpu.memory_space<vmem>>) attributes {dimension_semantics = [#tpu.dimension_semantics<parallel>, #tpu.dimension_semantics<arbitrary>], iteration_bounds = array<i64: 1, 1>, scalar_prefetch = 0 : i64, scratch_operands = 1 : i64, tpu.core_type = #tpu.core_type<tc>, window_params = [{transform_indices = @transform_0, window_bounds = array<i64: 8, 8, 128>}, {pipeline_mode = #tpu.pipeline_mode<synchronous>, transform_indices = @transform_1, window_bounds = array<i64: 128, 128>}, {pipeline_mode = #tpu.pipeline_mode<synchronous>, transform_indices = @transform_2, window_bounds = array<i64: 128, 128>}, {transform_indices = @transform_3, window_bounds = array<i64: 8, 8, 128>}, {transform_indices = @transform_4, window_bounds = array<i64: 8, 128>}]} {
    %c0_i32 = arith.constant 0 : i32
    %0 = arith.cmpi eq, %arg1, %c0_i32 : i32
    %1 = arith.extui %0 : i1 to i32
    %c0_i32_0 = arith.constant 0 : i32
    %2 = arith.cmpi ne, %1, %c0_i32_0 : i32
    scf.if %2 {
      %cst_86 = arith.constant 0.000000e+00 : f32
      %112 = vector.broadcast %cst_86 : f32 to vector<8x128xf32>
      %c0_87 = arith.constant 0 : index
      %c0_88 = arith.constant 0 : index
      %113 = vector.load %arg7[%c0_87, %c0_88] : memref<8x128xf32, #tpu.memory_space<vmem>>, vector<8x128xf32>
      tpu.vector_store %arg7[%c0_87, %c0_88], %112 {strides = array<i32>} : memref<8x128xf32, #tpu.memory_space<vmem>>, vector<8x128xf32>,
    } else {
    }
    %c0 = arith.constant 0 : index
    %c0_1 = arith.constant 0 : index
    %3 = vector.load %arg7[%c0, %c0_1] : memref<8x128xf32, #tpu.memory_space<vmem>>, vector<8x128xf32>
    %c0_i32_2 = arith.constant 0 : i32
    %4 = arith.index_cast %c0_i32_2 : i32 to index
    %c0_3 = arith.constant 0 : index
    %c0_4 = arith.constant 0 : index
    %5 = vector.load %arg2[%4, %c0_3, %c0_4] : memref<8x8x128xf32, #tpu.memory_space<vmem>>, vector<1x8x128xf32>
    %6 = vector.shape_cast %5 : vector<1x8x128xf32> to vector<8x128xf32>
    %c0_5 = arith.constant 0 : index
    %c0_6 = arith.constant 0 : index
    %7 = vector.load %arg3[%c0_5, %c0_6] : memref<128x128xf32, #tpu.memory_space<vmem>>, vector<128x128xf32>
    %cst = arith.constant dense<0.000000e+00> : vector<8x128xf32>
    %8 = tpu.matmul %3, %7, %cst {dimension_numbers = #tpu.dot_dimension_numbers<[1], [0], [0], [1], [0, 0, 1, 1], [], []>} : vector<8x128xf32>, vector<128x128xf32>, vector<8x128xf32> -> vector<8x128xf32>
    %9 = arith.addf %6, %8 : vector<8x128xf32>
    %10 = math.tanh %9 : vector<8x128xf32>
    %c0_7 = arith.constant 0 : index
    %c0_8 = arith.constant 0 : index
    %11 = vector.load %arg4[%c0_7, %c0_8] : memref<128x128xf32, #tpu.memory_space<vmem>>, vector<128x128xf32>
    %cst_9 = arith.constant dense<0.000000e+00> : vector<8x128xf32>
    %12 = tpu.matmul %10, %11, %cst_9 {dimension_numbers = #tpu.dot_dimension_numbers<[1], [0], [0], [1], [0, 0, 1, 1], [], []>} : vector<8x128xf32>, vector<128x128xf32>, vector<8x128xf32> -> vector<8x128xf32>
    %13 = arith.index_cast %c0_i32_2 : i32 to index
    %c0_10 = arith.constant 0 : index
    %c0_11 = arith.constant 0 : index
    %14 = vector.load %arg5[%13, %c0_10, %c0_11] : memref<8x8x128xf32, #tpu.memory_space<vmem>>, vector<1x8x128xf32>
    %15 = vector.shape_cast %14 : vector<1x8x128xf32> to vector<8x128xf32>
    %16 = vector.shape_cast %12 : vector<8x128xf32> to vector<1x8x128xf32>
    tpu.vector_store %arg5[%13, %c0_10, %c0_11], %16 {strides = array<i32>} : memref<8x8x128xf32, #tpu.memory_space<vmem>>, vector<1x8x128xf32>,
    %c1_i32 = arith.constant 1 : i32
    %17 = arith.index_cast %c1_i32 : i32 to index
    %c0_12 = arith.constant 0 : index
    %c0_13 = arith.constant 0 : index
    %18 = vector.load %arg2[%17, %c0_12, %c0_13] : memref<8x8x128xf32, #tpu.memory_space<vmem>>, vector<1x8x128xf32>
    %19 = vector.shape_cast %18 : vector<1x8x128xf32> to vector<8x128xf32>
    %c0_14 = arith.constant 0 : index
    %c0_15 = arith.constant 0 : index
    %20 = vector.load %arg3[%c0_14, %c0_15] : memref<128x128xf32, #tpu.memory_space<vmem>>, vector<128x128xf32>
    %cst_16 = arith.constant dense<0.000000e+00> : vector<8x128xf32>
    %21 = tpu.matmul %10, %20, %cst_16 {dimension_numbers = #tpu.dot_dimension_numbers<[1], [0], [0], [1], [0, 0, 1, 1], [], []>} : vector<8x128xf32>, vector<128x128xf32>, vector<8x128xf32> -> vector<8x128xf32>
    %22 = arith.addf %19, %21 : vector<8x128xf32>
    %23 = math.tanh %22 : vector<8x128xf32>
    %c0_17 = arith.constant 0 : index
    %c0_18 = arith.constant 0 : index
    %24 = vector.load %arg4[%c0_17, %c0_18] : memref<128x128xf32, #tpu.memory_space<vmem>>, vector<128x128xf32>
    %cst_19 = arith.constant dense<0.000000e+00> : vector<8x128xf32>
    %25 = tpu.matmul %23, %24, %cst_19 {dimension_numbers = #tpu.dot_dimension_numbers<[1], [0], [0], [1], [0, 0, 1, 1], [], []>} : vector<8x128xf32>, vector<128x128xf32>, vector<8x128xf32> -> vector<8x128xf32>
    %26 = arith.index_cast %c1_i32 : i32 to index
    %c0_20 = arith.constant 0 : index
    %c0_21 = arith.constant 0 : index
    %27 = vector.load %arg5[%26, %c0_20, %c0_21] : memref<8x8x128xf32, #tpu.memory_space<vmem>>, vector<1x8x128xf32>
    %28 = vector.shape_cast %27 : vector<1x8x128xf32> to vector<8x128xf32>
    %29 = vector.shape_cast %25 : vector<8x128xf32> to vector<1x8x128xf32>
    tpu.vector_store %arg5[%26, %c0_20, %c0_21], %29 {strides = array<i32>} : memref<8x8x128xf32, #tpu.memory_space<vmem>>, vector<1x8x128xf32>,
    %c2_i32 = arith.constant 2 : i32
    %30 = arith.index_cast %c2_i32 : i32 to index
    %c0_22 = arith.constant 0 : index
    %c0_23 = arith.constant 0 : index
    %31 = vector.load %arg2[%30, %c0_22, %c0_23] : memref<8x8x128xf32, #tpu.memory_space<vmem>>, vector<1x8x128xf32>
    %32 = vector.shape_cast %31 : vector<1x8x128xf32> to vector<8x128xf32>
    %c0_24 = arith.constant 0 : index
    %c0_25 = arith.constant 0 : index
    %33 = vector.load %arg3[%c0_24, %c0_25] : memref<128x128xf32, #tpu.memory_space<vmem>>, vector<128x128xf32>
    %cst_26 = arith.constant dense<0.000000e+00> : vector<8x128xf32>
    %34 = tpu.matmul %23, %33, %cst_26 {dimension_numbers = #tpu.dot_dimension_numbers<[1], [0], [0], [1], [0, 0, 1, 1], [], []>} : vector<8x128xf32>, vector<128x128xf32>, vector<8x128xf32> -> vector<8x128xf32>
    %35 = arith.addf %32, %34 : vector<8x128xf32>
    %36 = math.tanh %35 : vector<8x128xf32>
    %c0_27 = arith.constant 0 : index
    %c0_28 = arith.constant 0 : index
    %37 = vector.load %arg4[%c0_27, %c0_28] : memref<128x128xf32, #tpu.memory_space<vmem>>, vector<128x128xf32>
    %cst_29 = arith.constant dense<0.000000e+00> : vector<8x128xf32>
    %38 = tpu.matmul %36, %37, %cst_29 {dimension_numbers = #tpu.dot_dimension_numbers<[1], [0], [0], [1], [0, 0, 1, 1], [], []>} : vector<8x128xf32>, vector<128x128xf32>, vector<8x128xf32> -> vector<8x128xf32>
    %39 = arith.index_cast %c2_i32 : i32 to index
    %c0_30 = arith.constant 0 : index
    %c0_31 = arith.constant 0 : index
    %40 = vector.load %arg5[%39, %c0_30, %c0_31] : memref<8x8x128xf32, #tpu.memory_space<vmem>>, vector<1x8x128xf32>
    %41 = vector.shape_cast %40 : vector<1x8x128xf32> to vector<8x128xf32>
    %42 = vector.shape_cast %38 : vector<8x128xf32> to vector<1x8x128xf32>
    tpu.vector_store %arg5[%39, %c0_30, %c0_31], %42 {strides = array<i32>} : memref<8x8x128xf32, #tpu.memory_space<vmem>>, vector<1x8x128xf32>,
    %c3_i32 = arith.constant 3 : i32
    %43 = arith.index_cast %c3_i32 : i32 to index
    %c0_32 = arith.constant 0 : index
    %c0_33 = arith.constant 0 : index
    %44 = vector.load %arg2[%43, %c0_32, %c0_33] : memref<8x8x128xf32, #tpu.memory_space<vmem>>, vector<1x8x128xf32>
    %45 = vector.shape_cast %44 : vector<1x8x128xf32> to vector<8x128xf32>
    %c0_34 = arith.constant 0 : index
    %c0_35 = arith.constant 0 : index
    %46 = vector.load %arg3[%c0_34, %c0_35] : memref<128x128xf32, #tpu.memory_space<vmem>>, vector<128x128xf32>
    %cst_36 = arith.constant dense<0.000000e+00> : vector<8x128xf32>
    %47 = tpu.matmul %36, %46, %cst_36 {dimension_numbers = #tpu.dot_dimension_numbers<[1], [0], [0], [1], [0, 0, 1, 1], [], []>} : vector<8x128xf32>, vector<128x128xf32>, vector<8x128xf32> -> vector<8x128xf32>
    %48 = arith.addf %45, %47 : vector<8x128xf32>
    %49 = math.tanh %48 : vector<8x128xf32>
    %c0_37 = arith.constant 0 : index
    %c0_38 = arith.constant 0 : index
    %50 = vector.load %arg4[%c0_37, %c0_38] : memref<128x128xf32, #tpu.memory_space<vmem>>, vector<128x128xf32>
    %cst_39 = arith.constant dense<0.000000e+00> : vector<8x128xf32>
    %51 = tpu.matmul %49, %50, %cst_39 {dimension_numbers = #tpu.dot_dimension_numbers<[1], [0], [0], [1], [0, 0, 1, 1], [], []>} : vector<8x128xf32>, vector<128x128xf32>, vector<8x128xf32> -> vector<8x128xf32>
    %52 = arith.index_cast %c3_i32 : i32 to index
    %c0_40 = arith.constant 0 : index
    %c0_41 = arith.constant 0 : index
    %53 = vector.load %arg5[%52, %c0_40, %c0_41] : memref<8x8x128xf32, #tpu.memory_space<vmem>>, vector<1x8x128xf32>
    %54 = vector.shape_cast %53 : vector<1x8x128xf32> to vector<8x128xf32>
    %55 = vector.shape_cast %51 : vector<8x128xf32> to vector<1x8x128xf32>
    tpu.vector_store %arg5[%52, %c0_40, %c0_41], %55 {strides = array<i32>} : memref<8x8x128xf32, #tpu.memory_space<vmem>>, vector<1x8x128xf32>,
    %c4_i32 = arith.constant 4 : i32
    %56 = arith.index_cast %c4_i32 : i32 to index
    %c0_42 = arith.constant 0 : index
    %c0_43 = arith.constant 0 : index
    %57 = vector.load %arg2[%56, %c0_42, %c0_43] : memref<8x8x128xf32, #tpu.memory_space<vmem>>, vector<1x8x128xf32>
    %58 = vector.shape_cast %57 : vector<1x8x128xf32> to vector<8x128xf32>
    %c0_44 = arith.constant 0 : index
    %c0_45 = arith.constant 0 : index
    %59 = vector.load %arg3[%c0_44, %c0_45] : memref<128x128xf32, #tpu.memory_space<vmem>>, vector<128x128xf32>
    %cst_46 = arith.constant dense<0.000000e+00> : vector<8x128xf32>
    %60 = tpu.matmul %49, %59, %cst_46 {dimension_numbers = #tpu.dot_dimension_numbers<[1], [0], [0], [1], [0, 0, 1, 1], [], []>} : vector<8x128xf32>, vector<128x128xf32>, vector<8x128xf32> -> vector<8x128xf32>
    %61 = arith.addf %58, %60 : vector<8x128xf32>
    %62 = math.tanh %61 : vector<8x128xf32>
    %c0_47 = arith.constant 0 : index
    %c0_48 = arith.constant 0 : index
    %63 = vector.load %arg4[%c0_47, %c0_48] : memref<128x128xf32, #tpu.memory_space<vmem>>, vector<128x128xf32>
    %cst_49 = arith.constant dense<0.000000e+00> : vector<8x128xf32>
    %64 = tpu.matmul %62, %63, %cst_49 {dimension_numbers = #tpu.dot_dimension_numbers<[1], [0], [0], [1], [0, 0, 1, 1], [], []>} : vector<8x128xf32>, vector<128x128xf32>, vector<8x128xf32> -> vector<8x128xf32>
    %65 = arith.index_cast %c4_i32 : i32 to index
    %c0_50 = arith.constant 0 : index
    %c0_51 = arith.constant 0 : index
    %66 = vector.load %arg5[%65, %c0_50, %c0_51] : memref<8x8x128xf32, #tpu.memory_space<vmem>>, vector<1x8x128xf32>
    %67 = vector.shape_cast %66 : vector<1x8x128xf32> to vector<8x128xf32>
    %68 = vector.shape_cast %64 : vector<8x128xf32> to vector<1x8x128xf32>
    tpu.vector_store %arg5[%65, %c0_50, %c0_51], %68 {strides = array<i32>} : memref<8x8x128xf32, #tpu.memory_space<vmem>>, vector<1x8x128xf32>,
    %c5_i32 = arith.constant 5 : i32
    %69 = arith.index_cast %c5_i32 : i32 to index
    %c0_52 = arith.constant 0 : index
    %c0_53 = arith.constant 0 : index
    %70 = vector.load %arg2[%69, %c0_52, %c0_53] : memref<8x8x128xf32, #tpu.memory_space<vmem>>, vector<1x8x128xf32>
    %71 = vector.shape_cast %70 : vector<1x8x128xf32> to vector<8x128xf32>
    %c0_54 = arith.constant 0 : index
    %c0_55 = arith.constant 0 : index
    %72 = vector.load %arg3[%c0_54, %c0_55] : memref<128x128xf32, #tpu.memory_space<vmem>>, vector<128x128xf32>
    %cst_56 = arith.constant dense<0.000000e+00> : vector<8x128xf32>
    %73 = tpu.matmul %62, %72, %cst_56 {dimension_numbers = #tpu.dot_dimension_numbers<[1], [0], [0], [1], [0, 0, 1, 1], [], []>} : vector<8x128xf32>, vector<128x128xf32>, vector<8x128xf32> -> vector<8x128xf32>
    %74 = arith.addf %71, %73 : vector<8x128xf32>
    %75 = math.tanh %74 : vector<8x128xf32>
    %c0_57 = arith.constant 0 : index
    %c0_58 = arith.constant 0 : index
    %76 = vector.load %arg4[%c0_57, %c0_58] : memref<128x128xf32, #tpu.memory_space<vmem>>, vector<128x128xf32>
    %cst_59 = arith.constant dense<0.000000e+00> : vector<8x128xf32>
    %77 = tpu.matmul %75, %76, %cst_59 {dimension_numbers = #tpu.dot_dimension_numbers<[1], [0], [0], [1], [0, 0, 1, 1], [], []>} : vector<8x128xf32>, vector<128x128xf32>, vector<8x128xf32> -> vector<8x128xf32>
    %78 = arith.index_cast %c5_i32 : i32 to index
    %c0_60 = arith.constant 0 : index
    %c0_61 = arith.constant 0 : index
    %79 = vector.load %arg5[%78, %c0_60, %c0_61] : memref<8x8x128xf32, #tpu.memory_space<vmem>>, vector<1x8x128xf32>
    %80 = vector.shape_cast %79 : vector<1x8x128xf32> to vector<8x128xf32>
    %81 = vector.shape_cast %77 : vector<8x128xf32> to vector<1x8x128xf32>
    tpu.vector_store %arg5[%78, %c0_60, %c0_61], %81 {strides = array<i32>} : memref<8x8x128xf32, #tpu.memory_space<vmem>>, vector<1x8x128xf32>,
    %c6_i32 = arith.constant 6 : i32
    %82 = arith.index_cast %c6_i32 : i32 to index
    %c0_62 = arith.constant 0 : index
    %c0_63 = arith.constant 0 : index
    %83 = vector.load %arg2[%82, %c0_62, %c0_63] : memref<8x8x128xf32, #tpu.memory_space<vmem>>, vector<1x8x128xf32>
    %84 = vector.shape_cast %83 : vector<1x8x128xf32> to vector<8x128xf32>
    %c0_64 = arith.constant 0 : index
    %c0_65 = arith.constant 0 : index
    %85 = vector.load %arg3[%c0_64, %c0_65] : memref<128x128xf32, #tpu.memory_space<vmem>>, vector<128x128xf32>
    %cst_66 = arith.constant dense<0.000000e+00> : vector<8x128xf32>
    %86 = tpu.matmul %75, %85, %cst_66 {dimension_numbers = #tpu.dot_dimension_numbers<[1], [0], [0], [1], [0, 0, 1, 1], [], []>} : vector<8x128xf32>, vector<128x128xf32>, vector<8x128xf32> -> vector<8x128xf32>
    %87 = arith.addf %84, %86 : vector<8x128xf32>
    %88 = math.tanh %87 : vector<8x128xf32>
    %c0_67 = arith.constant 0 : index
    %c0_68 = arith.constant 0 : index
    %89 = vector.load %arg4[%c0_67, %c0_68] : memref<128x128xf32, #tpu.memory_space<vmem>>, vector<128x128xf32>
    %cst_69 = arith.constant dense<0.000000e+00> : vector<8x128xf32>
    %90 = tpu.matmul %88, %89, %cst_69 {dimension_numbers = #tpu.dot_dimension_numbers<[1], [0], [0], [1], [0, 0, 1, 1], [], []>} : vector<8x128xf32>, vector<128x128xf32>, vector<8x128xf32> -> vector<8x128xf32>
    %91 = arith.index_cast %c6_i32 : i32 to index
    %c0_70 = arith.constant 0 : index
    %c0_71 = arith.constant 0 : index
    %92 = vector.load %arg5[%91, %c0_70, %c0_71] : memref<8x8x128xf32, #tpu.memory_space<vmem>>, vector<1x8x128xf32>
    %93 = vector.shape_cast %92 : vector<1x8x128xf32> to vector<8x128xf32>
    %94 = vector.shape_cast %90 : vector<8x128xf32> to vector<1x8x128xf32>
    tpu.vector_store %arg5[%91, %c0_70, %c0_71], %94 {strides = array<i32>} : memref<8x8x128xf32, #tpu.memory_space<vmem>>, vector<1x8x128xf32>,
    %c7_i32 = arith.constant 7 : i32
    %95 = arith.index_cast %c7_i32 : i32 to index
    %c0_72 = arith.constant 0 : index
    %c0_73 = arith.constant 0 : index
    %96 = vector.load %arg2[%95, %c0_72, %c0_73] : memref<8x8x128xf32, #tpu.memory_space<vmem>>, vector<1x8x128xf32>
    %97 = vector.shape_cast %96 : vector<1x8x128xf32> to vector<8x128xf32>
    %c0_74 = arith.constant 0 : index
    %c0_75 = arith.constant 0 : index
    %98 = vector.load %arg3[%c0_74, %c0_75] : memref<128x128xf32, #tpu.memory_space<vmem>>, vector<128x128xf32>
    %cst_76 = arith.constant dense<0.000000e+00> : vector<8x128xf32>
    %99 = tpu.matmul %88, %98, %cst_76 {dimension_numbers = #tpu.dot_dimension_numbers<[1], [0], [0], [1], [0, 0, 1, 1], [], []>} : vector<8x128xf32>, vector<128x128xf32>, vector<8x128xf32> -> vector<8x128xf32>
    %100 = arith.addf %97, %99 : vector<8x128xf32>
    %101 = math.tanh %100 : vector<8x128xf32>
    %c0_77 = arith.constant 0 : index
    %c0_78 = arith.constant 0 : index
    %102 = vector.load %arg4[%c0_77, %c0_78] : memref<128x128xf32, #tpu.memory_space<vmem>>, vector<128x128xf32>
    %cst_79 = arith.constant dense<0.000000e+00> : vector<8x128xf32>
    %103 = tpu.matmul %101, %102, %cst_79 {dimension_numbers = #tpu.dot_dimension_numbers<[1], [0], [0], [1], [0, 0, 1, 1], [], []>} : vector<8x128xf32>, vector<128x128xf32>, vector<8x128xf32> -> vector<8x128xf32>
    %104 = arith.index_cast %c7_i32 : i32 to index
    %c0_80 = arith.constant 0 : index
    %c0_81 = arith.constant 0 : index
    %105 = vector.load %arg5[%104, %c0_80, %c0_81] : memref<8x8x128xf32, #tpu.memory_space<vmem>>, vector<1x8x128xf32>
    %106 = vector.shape_cast %105 : vector<1x8x128xf32> to vector<8x128xf32>
    %107 = vector.shape_cast %103 : vector<8x128xf32> to vector<1x8x128xf32>
    tpu.vector_store %arg5[%104, %c0_80, %c0_81], %107 {strides = array<i32>} : memref<8x8x128xf32, #tpu.memory_space<vmem>>, vector<1x8x128xf32>,
    %c8_i32 = arith.constant 8 : i32
    %c0_82 = arith.constant 0 : index
    %c0_83 = arith.constant 0 : index
    %108 = vector.load %arg7[%c0_82, %c0_83] : memref<8x128xf32, #tpu.memory_space<vmem>>, vector<8x128xf32>
    tpu.vector_store %arg7[%c0_82, %c0_83], %101 {strides = array<i32>} : memref<8x128xf32, #tpu.memory_space<vmem>>, vector<8x128xf32>,
    %c0_i32_84 = arith.constant 0 : i32
    %109 = arith.cmpi eq, %arg1, %c0_i32_84 : i32
    %110 = arith.extui %109 : i1 to i32
    %c0_i32_85 = arith.constant 0 : i32
    %111 = arith.cmpi ne, %110, %c0_i32_85 : i32
    scf.if %111 {
      %c0_86 = arith.constant 0 : index
      %c0_87 = arith.constant 0 : index
      %112 = vector.load %arg7[%c0_86, %c0_87] : memref<8x128xf32, #tpu.memory_space<vmem>>, vector<8x128xf32>
      %c0_88 = arith.constant 0 : index
      %c0_89 = arith.constant 0 : index
      %113 = vector.load %arg6[%c0_88, %c0_89] : memref<8x128xf32, #tpu.memory_space<vmem>>, vector<8x128xf32>
      tpu.vector_store %arg6[%c0_88, %c0_89], %112 {strides = array<i32>} : memref<8x128xf32, #tpu.memory_space<vmem>>, vector<8x128xf32>,
    } else {
    }
    return
  }
  func.func @transform_0(%arg0: i32, %arg1: i32) -> (i32, i32, i32) {
    %c0_i32 = arith.constant 0 : i32
    %c0_i32_0 = arith.constant 0 : i32
    return %arg1, %arg0, %c0_i32 : i32, i32, i32
  }
  func.func @transform_1(%arg0: i32, %arg1: i32) -> (i32, i32) {
    %c0_i32 = arith.constant 0 : i32
    %c0_i32_0 = arith.constant 0 : i32
    %c0_i32_1 = arith.constant 0 : i32
    return %c0_i32, %c0_i32_0 : i32, i32
  }
  func.func @transform_2(%arg0: i32, %arg1: i32) -> (i32, i32) {
    %c0_i32 = arith.constant 0 : i32
    %c0_i32_0 = arith.constant 0 : i32
    %c0_i32_1 = arith.constant 0 : i32
    return %c0_i32, %c0_i32_0 : i32, i32
  }
  func.func @transform_3(%arg0: i32, %arg1: i32) -> (i32, i32, i32) {
    %c0_i32 = arith.constant 0 : i32
    %c0_i32_0 = arith.constant 0 : i32
    return %arg1, %arg0, %c0_i32 : i32, i32, i32
  }
  func.func @transform_4(%arg0: i32, %arg1: i32) -> (i32, i32) {
    %c0_i32 = arith.constant 0 : i32
    %c0_i32_0 = arith.constant 0 : i32
    return %arg0, %c0_i32 : i32, i32
  }
}

</mosaic_0001>

<llo_original>
// kernel: tpu_custom_call.1
$region0: #{tpu_custom_call.1}
  #allocation0 [shape = 'u32[]', space=smem, size = 0x4, offset = 0x4, fixed_abs, tag = 'smem constant byte address 0x4 - core index']
  #allocation1 [shape = 'u32[144,128]{1,0:T(1,128)}', space=vmem, size = 0x12000, scoped, tag = 'internal scratch']
  #allocation2 [shape = 'f32[8,128]{1,0:T(8,128)}', space=vmem, size = 0x1000, scoped, tag = 'scratch operand']
  %s0 = inlined_call_operand.hbm [shape: f32[8,8,128], index: 0, kind: input, shape index: {}]
  %s1 = inlined_call_operand.hbm [shape: f32[128,128], index: 1, kind: input, shape index: {}]
  %s2 = inlined_call_operand.hbm [shape: f32[128,128], index: 2, kind: input, shape index: {}]
  %s3 = inlined_call_operand.hbm [shape: f32[8,8,128], index: 3, kind: output, shape index: {0}]
  %s4 = inlined_call_operand.hbm [shape: f32[8,128], index: 4, kind: output, shape index: {1}]
  %5 = xla_tuple %s3, %s4
  %s6 = sld [smem:[#allocation0]]
  $region50: #{tpu_custom_call.1} parent=0
    _
  %s8 = ssub.s32 1, %s6
  %s9 = scalar_select 0, %s8, %s6
  $region1: #{tpu_custom_call.1} parent=0
    #allocation3 [shape = 'u8[32768]{0}', space=vmem, size = 0x8000, scoped, tag = 'input window, operand 0, single buffered']
    #allocation4 [shape = 's32[1]{0}', space=sflag, size = 0x4, scoped, tag = 'scoped memory for tpu_custom_call.1']
    #allocation5 [shape = 's32[1]{0}', space=sflag, size = 0x4, scoped, tag = 'scoped memory for tpu_custom_call.1']
    #allocation6 [shape = 'u8[65536]{0}', space=vmem, size = 0x10000, scoped, tag = 'input window, operand 1, single buffered']
    #allocation7 [shape = 's32[1]{0}', space=sflag, size = 0x4, scoped, tag = 'scoped memory for tpu_custom_call.1']
    #allocation8 [shape = 'u8[65536]{0}', space=vmem, size = 0x10000, scoped, tag = 'input window, operand 2, single buffered']
    #allocation9 [shape = 'u8[32768]{0}', space=vmem, size = 0x8000, scoped, tag = 'output window, operand 0, single buffered']
    #allocation10 [shape = 'u8[4096]{0}', space=vmem, size = 0x1000, scoped, tag = 'output window, operand 1, single buffered']
    #allocation11 [shape = 's32[1]{0}', space=sflag, size = 0x4, scoped, tag = 'scoped memory for tpu_custom_call.1']
    %10 = vsyncpa [#allocation4], 0
    %11 = vsyncpa [#allocation7], 0
    %12 = vsyncpa [#allocation5], 0
    %13 = vsyncpa [#allocation11], 0
    // Predicated region
    $region2: #{tpu_custom_call.1} parent=1 // pred_check
      _
    $region3: #{tpu_custom_call.1} parent=1 // pred_check_branch
      %15 = sbr.rel (0) target = $region5
    $region4: #{tpu_custom_call.1} parent=1 // pred_region
      %s17 = ssub.s32 1024, 1024
      %18 = vsyncadd [#allocation4], %s17
      %s19 = sshll.u32 [#allocation3], 4
      %s20 = int_to_ptr.vmem [resolvable:$true] %s19
      %25 = dma.hbm_to_vmem [thread:$0]  %s0, 1024, %s20, [#allocation4], 128, 128, 8
    $region5: #{tpu_custom_call.1} parent=1 // pred_fallthru
      _
    // Predicated region
    $region6: #{tpu_custom_call.1} parent=1 // pred_check
      _
    $region7: #{tpu_custom_call.1} parent=1 // pred_check_branch
      %27 = sbr.rel (0) target = $region9
    $region8: #{tpu_custom_call.1} parent=1 // pred_region
      %s29 = ssub.s32 2048, 2048
      %30 = vsyncadd [#allocation7], %s29
      %s31 = sshll.u32 [#allocation6], 4
      %s32 = int_to_ptr.vmem [resolvable:$true] %s31
      %37 = dma.hbm_to_vmem [thread:$0]  %s1, 2048, %s32, [#allocation7], 128, 128, 8
    $region9: #{tpu_custom_call.1} parent=1 // pred_fallthru
      _
    // Predicated region
    $region10: #{tpu_custom_call.1} parent=1 // pred_check
      _
    $region11: #{tpu_custom_call.1} parent=1 // pred_check_branch
      %39 = sbr.rel (0) target = $region13
    $region12: #{tpu_custom_call.1} parent=1 // pred_region
      %s41 = ssub.s32 2048, 2048
      %42 = vsyncadd [#allocation7], %s41
      %s43 = sshll.u32 [#allocation8], 4
      %s44 = int_to_ptr.vmem [resolvable:$true] %s43
      %49 = dma.hbm_to_vmem [thread:$0]  %s2, 2048, %s44, [#allocation7], 128, 128, 8
    $region13: #{tpu_custom_call.1} parent=1 // pred_fallthru
      _
    // Predicated region
    $region14: #{tpu_custom_call.1} parent=1 // pred_check
      _
    $region15: #{tpu_custom_call.1} parent=1 // pred_check_branch
      %51 = sbr.rel (0) target = $region17
    $region16: #{tpu_custom_call.1} parent=1 // pred_region
      %52 = dma.done [#allocation4], 1024
    $region17: #{tpu_custom_call.1} parent=1 // pred_fallthru
      _
    // Predicated region
    $region18: #{tpu_custom_call.1} parent=1 // pred_check
      _
    $region19: #{tpu_custom_call.1} parent=1 // pred_check_branch
      %54 = sbr.rel (0) target = $region21
    $region20: #{tpu_custom_call.1} parent=1 // pred_region
      %55 = dma.done [#allocation7], 2048
    $region21: #{tpu_custom_call.1} parent=1 // pred_fallthru
      _
    // Predicated region
    $region22: #{tpu_custom_call.1} parent=1 // pred_check
      _
    $region23: #{tpu_custom_call.1} parent=1 // pred_check_branch
      %57 = sbr.rel (0) target = $region25
    $region24: #{tpu_custom_call.1} parent=1 // pred_region
      %58 = dma.done [#allocation7], 2048
    $region25: #{tpu_custom_call.1} parent=1 // pred_fallthru
      _
    %p59 = scmp.eq.s32.totalorder 0, 0
    // Predicated region
    $region26: #{tpu_custom_call.1} parent=1 // pred_check
      %p60 = pneg %p59
    $region27: #{tpu_custom_call.1} parent=1 // pred_check_branch
      %62 = sbr.rel (%p60) target = $region29
    $region28: #{tpu_custom_call.1} parent=1 // pred_region
      %63 = vst [vmem:[#allocation2] sm:$0xff] 0.0
    $region29: #{tpu_custom_call.1} parent=1 // pred_fallthru
      _
    %v64 = vld [vmem:[#allocation2] sm:$0xff]
    %v65 = vld [vmem:[#allocation3] sm:$0xff]
    %v66 = vld [vmem:[#allocation6] sm:$0xff]
    %v67 = vld [vmem:[#allocation6 + $0x8] sm:$0xff]
    %v68 = vld [vmem:[#allocation6 + $0x10] sm:$0xff]
    %v69 = vld [vmem:[#allocation6 + $0x18] sm:$0xff]
    %v70 = vld [vmem:[#allocation6 + $0x20] sm:$0xff]
    %v71 = vld [vmem:[#allocation6 + $0x28] sm:$0xff]
    %v72 = vld [vmem:[#allocation6 + $0x30] sm:$0xff]
    %v73 = vld [vmem:[#allocation6 + $0x38] sm:$0xff]
    %v74 = vld [vmem:[#allocation6 + $0x40] sm:$0xff]
    %v75 = vld [vmem:[#allocation6 + $0x48] sm:$0xff]
    %v76 = vld [vmem:[#allocation6 + $0x50] sm:$0xff]
    %v77 = vld [vmem:[#allocation6 + $0x58] sm:$0xff]
    %v78 = vld [vmem:[#allocation6 + $0x60] sm:$0xff]
    %v79 = vld [vmem:[#allocation6 + $0x68] sm:$0xff]
    %v80 = vld [vmem:[#allocation6 + $0x70] sm:$0xff]
    %v81 = vld [vmem:[#allocation6 + $0x78] sm:$0xff]
    %82 = vmatprep.subr.mxu0 0.0
    %83 = vmatpush1.msra.mxu0 %v66
    %84 = vmatprep.subr.mxu0 0.0
    %85 = vmatpush1.msra.mxu0 %v67
    %86 = vmatprep.subr.mxu0 0.0
    %87 = vmatpush1.msra.mxu0 %v68
    %88 = vmatprep.subr.mxu0 0.0
    %89 = vmatpush1.msra.mxu0 %v69
    %90 = vmatprep.subr.mxu0 0.0
    %91 = vmatpush1.msra.mxu0 %v70
    %92 = vmatprep.subr.mxu0 0.0
    %93 = vmatpush1.msra.mxu0 %v71
    %94 = vmatprep.subr.mxu0 0.0
    %95 = vmatpush1.msra.mxu0 %v72
    %96 = vmatprep.subr.mxu0 0.0
    %97 = vmatpush1.msra.mxu0 %v73
    %98 = vmatprep.subr.mxu0 0.0
    %99 = vmatpush1.msra.mxu0 %v74
    %100 = vmatprep.subr.mxu0 0.0
    %101 = vmatpush1.msra.mxu0 %v75
    %102 = vmatprep.subr.mxu0 0.0
    %103 = vmatpush1.msra.mxu0 %v76
    %104 = vmatprep.subr.mxu0 0.0
    %105 = vmatpush1.msra.mxu0 %v77
    %106 = vmatprep.subr.mxu0 0.0
    %107 = vmatpush1.msra.mxu0 %v78
    %108 = vmatprep.subr.mxu0 0.0
    %109 = vmatpush1.msra.mxu0 %v79
    %110 = vmatprep.subr.mxu0 0.0
    %111 = vmatpush1.msra.mxu0 %v80
    %112 = vmatprep.subr.mxu0 0.0
    %113 = vmatpush1.msra.mxu0 %v81
    %114 = vmatprep.subr.mxu0 0.0
    %115 = vmatpush1.msra.mxu0 0.0
    %116 = vmatprep.subr.mxu0 0.0
    %117 = vmatpush1.msra.mxu0 0.0
    %118 = vmatprep.subr.mxu0 0.0
    %119 = vmatpush1.msra.mxu0 0.0
    %120 = vmatprep.subr.mxu0 0.0
    %121 = vmatpush1.msra.mxu0 0.0
    %122 = vmatprep.subr.mxu0 0.0
    %123 = vmatpush1.msra.mxu0 0.0
    %124 = vmatprep.subr.mxu0 0.0
    %125 = vmatpush1.msra.mxu0 0.0
    %126 = vmatprep.subr.mxu0 0.0
    %127 = vmatpush1.msra.mxu0 0.0
    %128 = vmatprep.subr.mxu0 0.0
    %129 = vmatpush1.msra.mxu0 0.0
    %130 = vmatprep.subr.mxu0 0.0
    %131 = vmatpush1.msra.mxu0 0.0
    %132 = vmatprep.subr.mxu0 0.0
    %133 = vmatpush1.msra.mxu0 0.0
    %134 = vmatprep.subr.mxu0 0.0
    %135 = vmatpush1.msra.mxu0 0.0
    %136 = vmatprep.subr.mxu0 0.0
    %137 = vmatpush1.msra.mxu0 0.0
    %138 = vmatprep.subr.mxu0 0.0
    %139 = vmatpush1.msra.mxu0 0.0
    %140 = vmatprep.subr.mxu0 0.0
    %141 = vmatpush1.msra.mxu0 0.0
    %142 = vmatprep.subr.mxu0 0.0
    %143 = vmatpush1.msra.mxu0 0.0
    %144 = vmatprep.subr.mxu0 0.0
    %145 = vmatpush1.msra.mxu0 0.0
    %146 = vmatprep.mubr.f32.mxu0 0.0
    %147 = vmatmul.mubr.f32.gmra.mrb[0].mxu0 %v64
    %v148 = vpop.f32.mrb[0].mxu0
    %v149 = vadd.f32 0.0, %v148
    %v150 = vpop.f32.mrb[0].mxu0
    %151 = vdwg.mxu0
    %v152 = vadd.f32 %v65, %v149
    %v153 = vtanh.pop %v152
    %v154 = vld [vmem:[#allocation8] sm:$0xff]
    %v155 = vld [vmem:[#allocation8 + $0x8] sm:$0xff]
    %v156 = vld [vmem:[#allocation8 + $0x10] sm:$0xff]
    %v157 = vld [vmem:[#allocation8 + $0x18] sm:$0xff]
    %v158 = vld [vmem:[#allocation8 + $0x20] sm:$0xff]
    %v159 = vld [vmem:[#allocation8 + $0x28] sm:$0xff]
    %v160 = vld [vmem:[#allocation8 + $0x30] sm:$0xff]
    %v161 = vld [vmem:[#allocation8 + $0x38] sm:$0xff]
    %v162 = vld [vmem:[#allocation8 + $0x40] sm:$0xff]
    %v163 = vld [vmem:[#allocation8 + $0x48] sm:$0xff]
    %v164 = vld [vmem:[#allocation8 + $0x50] sm:$0xff]
    %v165 = vld [vmem:[#allocation8 + $0x58] sm:$0xff]
    %v166 = vld [vmem:[#allocation8 + $0x60] sm:$0xff]
    %v167 = vld [vmem:[#allocation8 + $0x68] sm:$0xff]
    %v168 = vld [vmem:[#allocation8 + $0x70] sm:$0xff]
    %v169 = vld [vmem:[#allocation8 + $0x78] sm:$0xff]
    %170 = vmatprep.subr.mxu0 0.0
    %171 = vmatpush1.msra.mxu0 %v154
    %172 = vmatprep.subr.mxu0 0.0
    %173 = vmatpush1.msra.mxu0 %v155
    %174 = vmatprep.subr.mxu0 0.0
    %175 = vmatpush1.msra.mxu0 %v156
    %176 = vmatprep.subr.mxu0 0.0
    %177 = vmatpush1.msra.mxu0 %v157
    %178 = vmatprep.subr.mxu0 0.0
    %179 = vmatpush1.msra.mxu0 %v158
    %180 = vmatprep.subr.mxu0 0.0
    %181 = vmatpush1.msra.mxu0 %v159
    %182 = vmatprep.subr.mxu0 0.0
    %183 = vmatpush1.msra.mxu0 %v160
    %184 = vmatprep.subr.mxu0 0.0
    %185 = vmatpush1.msra.mxu0 %v161
    %186 = vmatprep.subr.mxu0 0.0
    %187 = vmatpush1.msra.mxu0 %v162
    %188 = vmatprep.subr.mxu0 0.0
    %189 = vmatpush1.msra.mxu0 %v163
    %190 = vmatprep.subr.mxu0 0.0
    %191 = vmatpush1.msra.mxu0 %v164
    %192 = vmatprep.subr.mxu0 0.0
    %193 = vmatpush1.msra.mxu0 %v165
    %194 = vmatprep.subr.mxu0 0.0
    %195 = vmatpush1.msra.mxu0 %v166
    %196 = vmatprep.subr.mxu0 0.0
    %197 = vmatpush1.msra.mxu0 %v167
    %198 = vmatprep.subr.mxu0 0.0
    %199 = vmatpush1.msra.mxu0 %v168
    %200 = vmatprep.subr.mxu0 0.0
    %201 = vmatpush1.msra.mxu0 %v169
    %202 = vmatprep.subr.mxu0 0.0
    %203 = vmatpush1.msra.mxu0 0.0
    %204 = vmatprep.subr.mxu0 0.0
    %205 = vmatpush1.msra.mxu0 0.0
    %206 = vmatprep.subr.mxu0 0.0
    %207 = vmatpush1.msra.mxu0 0.0
    %208 = vmatprep.subr.mxu0 0.0
    %209 = vmatpush1.msra.mxu0 0.0
    %210 = vmatprep.subr.mxu0 0.0
    %211 = vmatpush1.msra.mxu0 0.0
    %212 = vmatprep.subr.mxu0 0.0
    %213 = vmatpush1.msra.mxu0 0.0
    %214 = vmatprep.subr.mxu0 0.0
    %215 = vmatpush1.msra.mxu0 0.0
    %216 = vmatprep.subr.mxu0 0.0
    %217 = vmatpush1.msra.mxu0 0.0
    %218 = vmatprep.subr.mxu0 0.0
    %219 = vmatpush1.msra.mxu0 0.0
    %220 = vmatprep.subr.mxu0 0.0
    %221 = vmatpush1.msra.mxu0 0.0
    %222 = vmatprep.subr.mxu0 0.0
    %223 = vmatpush1.msra.mxu0 0.0
    %224 = vmatprep.subr.mxu0 0.0
    %225 = vmatpush1.msra.mxu0 0.0
    %226 = vmatprep.subr.mxu0 0.0
    %227 = vmatpush1.msra.mxu0 0.0
    %228 = vmatprep.subr.mxu0 0.0
    %229 = vmatpush1.msra.mxu0 0.0
    %230 = vmatprep.subr.mxu0 0.0
    %231 = vmatpush1.msra.mxu0 0.0
    %232 = vmatprep.subr.mxu0 0.0
    %233 = vmatpush1.msra.mxu0 0.0
    %234 = vmatprep.mubr.f32.mxu0 0.0
    %235 = vmatmul.mubr.f32.gmra.mrb[0].mxu0 %v153
    %v236 = vpop.f32.mrb[0].mxu0
    %v237 = vadd.f32 0.0, %v236
    %v238 = vpop.f32.mrb[0].mxu0
    %239 = vdwg.mxu0
    %240 = vst [vmem:[#allocation9] sm:$0xff] %v237
    %s241 = scalar_lea.vmem [#allocation3], 8
    %v242 = vld [vmem:[%s241] sm:$0xff]
    %v243 = vld [vmem:[#allocation6] sm:$0xff]
    %v244 = vld [vmem:[#allocation6 + $0x8] sm:$0xff]
    %v245 = vld [vmem:[#allocation6 + $0x10] sm:$0xff]
    %v246 = vld [vmem:[#allocation6 + $0x18] sm:$0xff]
    %v247 = vld [vmem:[#allocation6 + $0x20] sm:$0xff]
    %v248 = vld [vmem:[#allocation6 + $0x28] sm:$0xff]
    %v249 = vld [vmem:[#allocation6 + $0x30] sm:$0xff]
    %v250 = vld [vmem:[#allocation6 + $0x38] sm:$0xff]
    %v251 = vld [vmem:[#allocation6 + $0x40] sm:$0xff]
    %v252 = vld [vmem:[#allocation6 + $0x48] sm:$0xff]
    %v253 = vld [vmem:[#allocation6 + $0x50] sm:$0xff]
    %v254 = vld [vmem:[#allocation6 + $0x58] sm:$0xff]
    %v255 = vld [vmem:[#allocation6 + $0x60] sm:$0xff]
    %v256 = vld [vmem:[#allocation6 + $0x68] sm:$0xff]
    %v257 = vld [vmem:[#allocation6 + $0x70] sm:$0xff]
    %v258 = vld [vmem:[#allocation6 + $0x78] sm:$0xff]
    %259 = vmatprep.subr.mxu0 0.0
    %260 = vmatpush1.msra.mxu0 %v243
    %261 = vmatprep.subr.mxu0 0.0
    %262 = vmatpush1.msra.mxu0 %v244
    %263 = vmatprep.subr.mxu0 0.0
    %264 = vmatpush1.msra.mxu0 %v245
    %265 = vmatprep.subr.mxu0 0.0
    %266 = vmatpush1.msra.mxu0 %v246
    %267 = vmatprep.subr.mxu0 0.0
    %268 = vmatpush1.msra.mxu0 %v247
    %269 = vmatprep.subr.mxu0 0.0
    %270 = vmatpush1.msra.mxu0 %v248
    %271 = vmatprep.subr.mxu0 0.0
    %272 = vmatpush1.msra.mxu0 %v249
    %273 = vmatprep.subr.mxu0 0.0
    %274 = vmatpush1.msra.mxu0 %v250
    %275 = vmatprep.subr.mxu0 0.0
    %276 = vmatpush1.msra.mxu0 %v251
    %277 = vmatprep.subr.mxu0 0.0
    %278 = vmatpush1.msra.mxu0 %v252
    %279 = vmatprep.subr.mxu0 0.0
    %280 = vmatpush1.msra.mxu0 %v253
    %281 = vmatprep.subr.mxu0 0.0
    %282 = vmatpush1.msra.mxu0 %v254
    %283 = vmatprep.subr.mxu0 0.0
    %284 = vmatpush1.msra.mxu0 %v255
    %285 = vmatprep.subr.mxu0 0.0
    %286 = vmatpush1.msra.mxu0 %v256
    %287 = vmatprep.subr.mxu0 0.0
    %288 = vmatpush1.msra.mxu0 %v257
    %289 = vmatprep.subr.mxu0 0.0
    %290 = vmatpush1.msra.mxu0 %v258
    %291 = vmatprep.subr.mxu0 0.0
    %292 = vmatpush1.msra.mxu0 0.0
    %293 = vmatprep.subr.mxu0 0.0
    %294 = vmatpush1.msra.mxu0 0.0
    %295 = vmatprep.subr.mxu0 0.0
    %296 = vmatpush1.msra.mxu0 0.0
    %297 = vmatprep.subr.mxu0 0.0
    %298 = vmatpush1.msra.mxu0 0.0
    %299 = vmatprep.subr.mxu0 0.0
    %300 = vmatpush1.msra.mxu0 0.0
    %301 = vmatprep.subr.mxu0 0.0
    %302 = vmatpush1.msra.mxu0 0.0
    %303 = vmatprep.subr.mxu0 0.0
    %304 = vmatpush1.msra.mxu0 0.0
    %305 = vmatprep.subr.mxu0 0.0
    %306 = vmatpush1.msra.mxu0 0.0
    %307 = vmatprep.subr.mxu0 0.0
    %308 = vmatpush1.msra.mxu0 0.0
    %309 = vmatprep.subr.mxu0 0.0
    %310 = vmatpush1.msra.mxu0 0.0
    %311 = vmatprep.subr.mxu0 0.0
    %312 = vmatpush1.msra.mxu0 0.0
    %313 = vmatprep.subr.mxu0 0.0
    %314 = vmatpush1.msra.mxu0 0.0
    %315 = vmatprep.subr.mxu0 0.0
    %316 = vmatpush1.msra.mxu0 0.0
    %317 = vmatprep.subr.mxu0 0.0
    %318 = vmatpush1.msra.mxu0 0.0
    %319 = vmatprep.subr.mxu0 0.0
    %320 = vmatpush1.msra.mxu0 0.0
    %321 = vmatprep.subr.mxu0 0.0
    %322 = vmatpush1.msra.mxu0 0.0
    %323 = vmatprep.mubr.f32.mxu0 0.0
    %324 = vmatmul.mubr.f32.gmra.mrb[0].mxu0 %v153
    %v325 = vpop.f32.mrb[0].mxu0
    %v326 = vadd.f32 0.0, %v325
    %v327 = vpop.f32.mrb[0].mxu0
    %328 = vdwg.mxu0
    %v329 = vadd.f32 %v242, %v326
    %v330 = vtanh.pop %v329
    %v331 = vld [vmem:[#allocation8] sm:$0xff]
    %v332 = vld [vmem:[#allocation8 + $0x8] sm:$0xff]
    %v333 = vld [vmem:[#allocation8 + $0x10] sm:$0xff]
    %v334 = vld [vmem:[#allocation8 + $0x18] sm:$0xff]
    %v335 = vld [vmem:[#allocation8 + $0x20] sm:$0xff]
    %v336 = vld [vmem:[#allocation8 + $0x28] sm:$0xff]
    %v337 = vld [vmem:[#allocation8 + $0x30] sm:$0xff]
    %v338 = vld [vmem:[#allocation8 + $0x38] sm:$0xff]
    %v339 = vld [vmem:[#allocation8 + $0x40] sm:$0xff]
    %v340 = vld [vmem:[#allocation8 + $0x48] sm:$0xff]
    %v341 = vld [vmem:[#allocation8 + $0x50] sm:$0xff]
    %v342 = vld [vmem:[#allocation8 + $0x58] sm:$0xff]
    %v343 = vld [vmem:[#allocation8 + $0x60] sm:$0xff]
    %v344 = vld [vmem:[#allocation8 + $0x68] sm:$0xff]
    %v345 = vld [vmem:[#allocation8 + $0x70] sm:$0xff]
    %v346 = vld [vmem:[#allocation8 + $0x78] sm:$0xff]
    %347 = vmatprep.subr.mxu0 0.0
    %348 = vmatpush1.msra.mxu0 %v331
    %349 = vmatprep.subr.mxu0 0.0
    %350 = vmatpush1.msra.mxu0 %v332
    %351 = vmatprep.subr.mxu0 0.0
    %352 = vmatpush1.msra.mxu0 %v333
    %353 = vmatprep.subr.mxu0 0.0
    %354 = vmatpush1.msra.mxu0 %v334
    %355 = vmatprep.subr.mxu0 0.0
    %356 = vmatpush1.msra.mxu0 %v335
    %357 = vmatprep.subr.mxu0 0.0
    %358 = vmatpush1.msra.mxu0 %v336
    %359 = vmatprep.subr.mxu0 0.0
    %360 = vmatpush1.msra.mxu0 %v337
    %361 = vmatprep.subr.mxu0 0.0
    %362 = vmatpush1.msra.mxu0 %v338
    %363 = vmatprep.subr.mxu0 0.0
    %364 = vmatpush1.msra.mxu0 %v339
    %365 = vmatprep.subr.mxu0 0.0
    %366 = vmatpush1.msra.mxu0 %v340
    %367 = vmatprep.subr.mxu0 0.0
    %368 = vmatpush1.msra.mxu0 %v341
    %369 = vmatprep.subr.mxu0 0.0
    %370 = vmatpush1.msra.mxu0 %v342
    %371 = vmatprep.subr.mxu0 0.0
    %372 = vmatpush1.msra.mxu0 %v343
    %373 = vmatprep.subr.mxu0 0.0
    %374 = vmatpush1.msra.mxu0 %v344
    %375 = vmatprep.subr.mxu0 0.0
    %376 = vmatpush1.msra.mxu0 %v345
    %377 = vmatprep.subr.mxu0 0.0
    %378 = vmatpush1.msra.mxu0 %v346
    %379 = vmatprep.subr.mxu0 0.0
    %380 = vmatpush1.msra.mxu0 0.0
    %381 = vmatprep.subr.mxu0 0.0
    %382 = vmatpush1.msra.mxu0 0.0
    %383 = vmatprep.subr.mxu0 0.0
    %384 = vmatpush1.msra.mxu0 0.0
    %385 = vmatprep.subr.mxu0 0.0
    %386 = vmatpush1.msra.mxu0 0.0
    %387 = vmatprep.subr.mxu0 0.0
    %388 = vmatpush1.msra.mxu0 0.0
    %389 = vmatprep.subr.mxu0 0.0
    %390 = vmatpush1.msra.mxu0 0.0
    %391 = vmatprep.subr.mxu0 0.0
    %392 = vmatpush1.msra.mxu0 0.0
    %393 = vmatprep.subr.mxu0 0.0
    %394 = vmatpush1.msra.mxu0 0.0
    %395 = vmatprep.subr.mxu0 0.0
    %396 = vmatpush1.msra.mxu0 0.0
    %397 = vmatprep.subr.mxu0 0.0
    %398 = vmatpush1.msra.mxu0 0.0
    %399 = vmatprep.subr.mxu0 0.0
    %400 = vmatpush1.msra.mxu0 0.0
    %401 = vmatprep.subr.mxu0 0.0
    %402 = vmatpush1.msra.mxu0 0.0
    %403 = vmatprep.subr.mxu0 0.0
    %404 = vmatpush1.msra.mxu0 0.0
    %405 = vmatprep.subr.mxu0 0.0
    %406 = vmatpush1.msra.mxu0 0.0
    %407 = vmatprep.subr.mxu0 0.0
    %408 = vmatpush1.msra.mxu0 0.0
    %409 = vmatprep.subr.mxu0 0.0
    %410 = vmatpush1.msra.mxu0 0.0
    %411 = vmatprep.mubr.f32.mxu0 0.0
    %412 = vmatmul.mubr.f32.gmra.mrb[0].mxu0 %v330
    %v413 = vpop.f32.mrb[0].mxu0
    %v414 = vadd.f32 0.0, %v413
    %v415 = vpop.f32.mrb[0].mxu0
    %416 = vdwg.mxu0
    %s417 = scalar_lea.vmem [#allocation9], 8
    %418 = vst [vmem:[%s417] sm:$0xff] %v414
    %s419 = scalar_lea.vmem [#allocation3], 16
    %v420 = vld [vmem:[%s419] sm:$0xff]
    %v421 = vld [vmem:[#allocation6] sm:$0xff]
    %v422 = vld [vmem:[#allocation6 + $0x8] sm:$0xff]
    %v423 = vld [vmem:[#allocation6 + $0x10] sm:$0xff]
    %v424 = vld [vmem:[#allocation6 + $0x18] sm:$0xff]
    %v425 = vld [vmem:[#allocation6 + $0x20] sm:$0xff]
    %v426 = vld [vmem:[#allocation6 + $0x28] sm:$0xff]
    %v427 = vld [vmem:[#allocation6 + $0x30] sm:$0xff]
    %v428 = vld [vmem:[#allocation6 + $0x38] sm:$0xff]
    %v429 = vld [vmem:[#allocation6 + $0x40] sm:$0xff]
    %v430 = vld [vmem:[#allocation6 + $0x48] sm:$0xff]
    %v431 = vld [vmem:[#allocation6 + $0x50] sm:$0xff]
    %v432 = vld [vmem:[#allocation6 + $0x58] sm:$0xff]
    %v433 = vld [vmem:[#allocation6 + $0x60] sm:$0xff]
    %v434 = vld [vmem:[#allocation6 + $0x68] sm:$0xff]
    %v435 = vld [vmem:[#allocation6 + $0x70] sm:$0xff]
    %v436 = vld [vmem:[#allocation6 + $0x78] sm:$0xff]
    %437 = vmatprep.subr.mxu0 0.0
    %438 = vmatpush1.msra.mxu0 %v421
    %439 = vmatprep.subr.mxu0 0.0
    %440 = vmatpush1.msra.mxu0 %v422
    %441 = vmatprep.subr.mxu0 0.0
    %442 = vmatpush1.msra.mxu0 %v423
    %443 = vmatprep.subr.mxu0 0.0
    %444 = vmatpush1.msra.mxu0 %v424
    %445 = vmatprep.subr.mxu0 0.0
    %446 = vmatpush1.msra.mxu0 %v425
    %447 = vmatprep.subr.mxu0 0.0
    %448 = vmatpush1.msra.mxu0 %v426
    %449 = vmatprep.subr.mxu0 0.0
    %450 = vmatpush1.msra.mxu0 %v427
    %451 = vmatprep.subr.mxu0 0.0
    %452 = vmatpush1.msra.mxu0 %v428
    %453 = vmatprep.subr.mxu0 0.0
    %454 = vmatpush1.msra.mxu0 %v429
    %455 = vmatprep.subr.mxu0 0.0
    %456 = vmatpush1.msra.mxu0 %v430
    %457 = vmatprep.subr.mxu0 0.0
    %458 = vmatpush1.msra.mxu0 %v431
    %459 = vmatprep.subr.mxu0 0.0
    %460 = vmatpush1.msra.mxu0 %v432
    %461 = vmatprep.subr.mxu0 0.0
    %462 = vmatpush1.msra.mxu0 %v433
    %463 = vmatprep.subr.mxu0 0.0
    %464 = vmatpush1.msra.mxu0 %v434
    %465 = vmatprep.subr.mxu0 0.0
    %466 = vmatpush1.msra.mxu0 %v435
    %467 = vmatprep.subr.mxu0 0.0
    %468 = vmatpush1.msra.mxu0 %v436
    %469 = vmatprep.subr.mxu0 0.0
    %470 = vmatpush1.msra.mxu0 0.0
    %471 = vmatprep.subr.mxu0 0.0
    %472 = vmatpush1.msra.mxu0 0.0
    %473 = vmatprep.subr.mxu0 0.0
    %474 = vmatpush1.msra.mxu0 0.0
    %475 = vmatprep.subr.mxu0 0.0
    %476 = vmatpush1.msra.mxu0 0.0
    %477 = vmatprep.subr.mxu0 0.0
    %478 = vmatpush1.msra.mxu0 0.0
    %479 = vmatprep.subr.mxu0 0.0
    %480 = vmatpush1.msra.mxu0 0.0
    %481 = vmatprep.subr.mxu0 0.0
    %482 = vmatpush1.msra.mxu0 0.0
    %483 = vmatprep.subr.mxu0 0.0
    %484 = vmatpush1.msra.mxu0 0.0
    %485 = vmatprep.subr.mxu0 0.0
    %486 = vmatpush1.msra.mxu0 0.0
    %487 = vmatprep.subr.mxu0 0.0
    %488 = vmatpush1.msra.mxu0 0.0
    %489 = vmatprep.subr.mxu0 0.0
    %490 = vmatpush1.msra.mxu0 0.0
    %491 = vmatprep.subr.mxu0 0.0
    %492 = vmatpush1.msra.mxu0 0.0
    %493 = vmatprep.subr.mxu0 0.0
    %494 = vmatpush1.msra.mxu0 0.0
    %495 = vmatprep.subr.mxu0 0.0
    %496 = vmatpush1.msra.mxu0 0.0
    %497 = vmatprep.subr.mxu0 0.0
    %498 = vmatpush1.msra.mxu0 0.0
    %499 = vmatprep.subr.mxu0 0.0
    %500 = vmatpush1.msra.mxu0 0.0
    %501 = vmatprep.mubr.f32.mxu0 0.0
    %502 = vmatmul.mubr.f32.gmra.mrb[0].mxu0 %v330
    %v503 = vpop.f32.mrb[0].mxu0
    %v504 = vadd.f32 0.0, %v503
    %v505 = vpop.f32.mrb[0].mxu0
    %506 = vdwg.mxu0
    %v507 = vadd.f32 %v420, %v504
    %v508 = vtanh.pop %v507
    %v509 = vld [vmem:[#allocation8] sm:$0xff]
    %v510 = vld [vmem:[#allocation8 + $0x8] sm:$0xff]
    %v511 = vld [vmem:[#allocation8 + $0x10] sm:$0xff]
    %v512 = vld [vmem:[#allocation8 + $0x18] sm:$0xff]
    %v513 = vld [vmem:[#allocation8 + $0x20] sm:$0xff]
    %v514 = vld [vmem:[#allocation8 + $0x28] sm:$0xff]
    %v515 = vld [vmem:[#allocation8 + $0x30] sm:$0xff]
    %v516 = vld [vmem:[#allocation8 + $0x38] sm:$0xff]
    %v517 = vld [vmem:[#allocation8 + $0x40] sm:$0xff]
    %v518 = vld [vmem:[#allocation8 + $0x48] sm:$0xff]
    %v519 = vld [vmem:[#allocation8 + $0x50] sm:$0xff]
    %v520 = vld [vmem:[#allocation8 + $0x58] sm:$0xff]
    %v521 = vld [vmem:[#allocation8 + $0x60] sm:$0xff]
    %v522 = vld [vmem:[#allocation8 + $0x68] sm:$0xff]
    %v523 = vld [vmem:[#allocation8 + $0x70] sm:$0xff]
    %v524 = vld [vmem:[#allocation8 + $0x78] sm:$0xff]
    %525 = vmatprep.subr.mxu0 0.0
    %526 = vmatpush1.msra.mxu0 %v509
    %527 = vmatprep.subr.mxu0 0.0
    %528 = vmatpush1.msra.mxu0 %v510
    %529 = vmatprep.subr.mxu0 0.0
    %530 = vmatpush1.msra.mxu0 %v511
    %531 = vmatprep.subr.mxu0 0.0
    %532 = vmatpush1.msra.mxu0 %v512
    %533 = vmatprep.subr.mxu0 0.0
    %534 = vmatpush1.msra.mxu0 %v513
    %535 = vmatprep.subr.mxu0 0.0
    %536 = vmatpush1.msra.mxu0 %v514
    %537 = vmatprep.subr.mxu0 0.0
    %538 = vmatpush1.msra.mxu0 %v515
    %539 = vmatprep.subr.mxu0 0.0
    %540 = vmatpush1.msra.mxu0 %v516
    %541 = vmatprep.subr.mxu0 0.0
    %542 = vmatpush1.msra.mxu0 %v517
    %543 = vmatprep.subr.mxu0 0.0
    %544 = vmatpush1.msra.mxu0 %v518
    %545 = vmatprep.subr.mxu0 0.0
    %546 = vmatpush1.msra.mxu0 %v519
    %547 = vmatprep.subr.mxu0 0.0
    %548 = vmatpush1.msra.mxu0 %v520
    %549 = vmatprep.subr.mxu0 0.0
    %550 = vmatpush1.msra.mxu0 %v521
    %551 = vmatprep.subr.mxu0 0.0
    %552 = vmatpush1.msra.mxu0 %v522
    %553 = vmatprep.subr.mxu0 0.0
    %554 = vmatpush1.msra.mxu0 %v523
    %555 = vmatprep.subr.mxu0 0.0
    %556 = vmatpush1.msra.mxu0 %v524
    %557 = vmatprep.subr.mxu0 0.0
    %558 = vmatpush1.msra.mxu0 0.0
    %559 = vmatprep.subr.mxu0 0.0
    %560 = vmatpush1.msra.mxu0 0.0
    %561 = vmatprep.subr.mxu0 0.0
    %562 = vmatpush1.msra.mxu0 0.0
    %563 = vmatprep.subr.mxu0 0.0
    %564 = vmatpush1.msra.mxu0 0.0
    %565 = vmatprep.subr.mxu0 0.0
    %566 = vmatpush1.msra.mxu0 0.0
    %567 = vmatprep.subr.mxu0 0.0
    %568 = vmatpush1.msra.mxu0 0.0
    %569 = vmatprep.subr.mxu0 0.0
    %570 = vmatpush1.msra.mxu0 0.0
    %571 = vmatprep.subr.mxu0 0.0
    %572 = vmatpush1.msra.mxu0 0.0
    %573 = vmatprep.subr.mxu0 0.0
    %574 = vmatpush1.msra.mxu0 0.0
    %575 = vmatprep.subr.mxu0 0.0
    %576 = vmatpush1.msra.mxu0 0.0
    %577 = vmatprep.subr.mxu0 0.0
    %578 = vmatpush1.msra.mxu0 0.0
    %579 = vmatprep.subr.mxu0 0.0
    %580 = vmatpush1.msra.mxu0 0.0
    %581 = vmatprep.subr.mxu0 0.0
    %582 = vmatpush1.msra.mxu0 0.0
    %583 = vmatprep.subr.mxu0 0.0
    %584 = vmatpush1.msra.mxu0 0.0
    %585 = vmatprep.subr.mxu0 0.0
    %586 = vmatpush1.msra.mxu0 0.0
    %587 = vmatprep.subr.mxu0 0.0
    %588 = vmatpush1.msra.mxu0 0.0
    %589 = vmatprep.mubr.f32.mxu0 0.0
    %590 = vmatmul.mubr.f32.gmra.mrb[0].mxu0 %v508
    %v591 = vpop.f32.mrb[0].mxu0
    %v592 = vadd.f32 0.0, %v591
    %v593 = vpop.f32.mrb[0].mxu0
    %594 = vdwg.mxu0
    %s595 = scalar_lea.vmem [#allocation9], 16
    %596 = vst [vmem:[%s595] sm:$0xff] %v592
    %s597 = scalar_lea.vmem [#allocation3], 24
    %v598 = vld [vmem:[%s597] sm:$0xff]
    %v599 = vld [vmem:[#allocation6] sm:$0xff]
    %v600 = vld [vmem:[#allocation6 + $0x8] sm:$0xff]
    %v601 = vld [vmem:[#allocation6 + $0x10] sm:$0xff]
    %v602 = vld [vmem:[#allocation6 + $0x18] sm:$0xff]
    %v603 = vld [vmem:[#allocation6 + $0x20] sm:$0xff]
    %v604 = vld [vmem:[#allocation6 + $0x28] sm:$0xff]
    %v605 = vld [vmem:[#allocation6 + $0x30] sm:$0xff]
    %v606 = vld [vmem:[#allocation6 + $0x38] sm:$0xff]
    %v607 = vld [vmem:[#allocation6 + $0x40] sm:$0xff]
    %v608 = vld [vmem:[#allocation6 + $0x48] sm:$0xff]
    %v609 = vld [vmem:[#allocation6 + $0x50] sm:$0xff]
    %v610 = vld [vmem:[#allocation6 + $0x58] sm:$0xff]
    %v611 = vld [vmem:[#allocation6 + $0x60] sm:$0xff]
    %v612 = vld [vmem:[#allocation6 + $0x68] sm:$0xff]
    %v613 = vld [vmem:[#allocation6 + $0x70] sm:$0xff]
    %v614 = vld [vmem:[#allocation6 + $0x78] sm:$0xff]
    %615 = vmatprep.subr.mxu0 0.0
    %616 = vmatpush1.msra.mxu0 %v599
    %617 = vmatprep.subr.mxu0 0.0
    %618 = vmatpush1.msra.mxu0 %v600
    %619 = vmatprep.subr.mxu0 0.0
    %620 = vmatpush1.msra.mxu0 %v601
    %621 = vmatprep.subr.mxu0 0.0
    %622 = vmatpush1.msra.mxu0 %v602
    %623 = vmatprep.subr.mxu0 0.0
    %624 = vmatpush1.msra.mxu0 %v603
    %625 = vmatprep.subr.mxu0 0.0
    %626 = vmatpush1.msra.mxu0 %v604
    %627 = vmatprep.subr.mxu0 0.0
    %628 = vmatpush1.msra.mxu0 %v605
    %629 = vmatprep.subr.mxu0 0.0
    %630 = vmatpush1.msra.mxu0 %v606
    %631 = vmatprep.subr.mxu0 0.0
    %632 = vmatpush1.msra.mxu0 %v607
    %633 = vmatprep.subr.mxu0 0.0
    %634 = vmatpush1.msra.mxu0 %v608
    %635 = vmatprep.subr.mxu0 0.0
    %636 = vmatpush1.msra.mxu0 %v609
    %637 = vmatprep.subr.mxu0 0.0
    %638 = vmatpush1.msra.mxu0 %v610
    %639 = vmatprep.subr.mxu0 0.0
    %640 = vmatpush1.msra.mxu0 %v611
    %641 = vmatprep.subr.mxu0 0.0
    %642 = vmatpush1.msra.mxu0 %v612
    %643 = vmatprep.subr.mxu0 0.0
    %644 = vmatpush1.msra.mxu0 %v613
    %645 = vmatprep.subr.mxu0 0.0
    %646 = vmatpush1.msra.mxu0 %v614
    %647 = vmatprep.subr.mxu0 0.0
    %648 = vmatpush1.msra.mxu0 0.0
    %649 = vmatprep.subr.mxu0 0.0
    %650 = vmatpush1.msra.mxu0 0.0
    %651 = vmatprep.subr.mxu0 0.0
    %652 = vmatpush1.msra.mxu0 0.0
    %653 = vmatprep.subr.mxu0 0.0
    %654 = vmatpush1.msra.mxu0 0.0
    %655 = vmatprep.subr.mxu0 0.0
    %656 = vmatpush1.msra.mxu0 0.0
    %657 = vmatprep.subr.mxu0 0.0
    %658 = vmatpush1.msra.mxu0 0.0
    %659 = vmatprep.subr.mxu0 0.0
    %660 = vmatpush1.msra.mxu0 0.0
    %661 = vmatprep.subr.mxu0 0.0
    %662 = vmatpush1.msra.mxu0 0.0
    %663 = vmatprep.subr.mxu0 0.0
    %664 = vmatpush1.msra.mxu0 0.0
    %665 = vmatprep.subr.mxu0 0.0
    %666 = vmatpush1.msra.mxu0 0.0
    %667 = vmatprep.subr.mxu0 0.0
    %668 = vmatpush1.msra.mxu0 0.0
    %669 = vmatprep.subr.mxu0 0.0
    %670 = vmatpush1.msra.mxu0 0.0
    %671 = vmatprep.subr.mxu0 0.0
    %672 = vmatpush1.msra.mxu0 0.0
    %673 = vmatprep.subr.mxu0 0.0
    %674 = vmatpush1.msra.mxu0 0.0
    %675 = vmatprep.subr.mxu0 0.0
    %676 = vmatpush1.msra.mxu0 0.0
    %677 = vmatprep.subr.mxu0 0.0
    %678 = vmatpush1.msra.mxu0 0.0
    %679 = vmatprep.mubr.f32.mxu0 0.0
    %680 = vmatmul.mubr.f32.gmra.mrb[0].mxu0 %v508
    %v681 = vpop.f32.mrb[0].mxu0
    %v682 = vadd.f32 0.0, %v681
    %v683 = vpop.f32.mrb[0].mxu0
    %684 = vdwg.mxu0
    %v685 = vadd.f32 %v598, %v682
    %v686 = vtanh.pop %v685
    %v687 = vld [vmem:[#allocation8] sm:$0xff]
    %v688 = vld [vmem:[#allocation8 + $0x8] sm:$0xff]
    %v689 = vld [vmem:[#allocation8 + $0x10] sm:$0xff]
    %v690 = vld [vmem:[#allocation8 + $0x18] sm:$0xff]
    %v691 = vld [vmem:[#allocation8 + $0x20] sm:$0xff]
    %v692 = vld [vmem:[#allocation8 + $0x28] sm:$0xff]
    %v693 = vld [vmem:[#allocation8 + $0x30] sm:$0xff]
    %v694 = vld [vmem:[#allocation8 + $0x38] sm:$0xff]
    %v695 = vld [vmem:[#allocation8 + $0x40] sm:$0xff]
    %v696 = vld [vmem:[#allocation8 + $0x48] sm:$0xff]
    %v697 = vld [vmem:[#allocation8 + $0x50] sm:$0xff]
    %v698 = vld [vmem:[#allocation8 + $0x58] sm:$0xff]
    %v699 = vld [vmem:[#allocation8 + $0x60] sm:$0xff]
    %v700 = vld [vmem:[#allocation8 + $0x68] sm:$0xff]
    %v701 = vld [vmem:[#allocation8 + $0x70] sm:$0xff]
    %v702 = vld [vmem:[#allocation8 + $0x78] sm:$0xff]
    %703 = vmatprep.subr.mxu0 0.0
    %704 = vmatpush1.msra.mxu0 %v687
    %705 = vmatprep.subr.mxu0 0.0
    %706 = vmatpush1.msra.mxu0 %v688
    %707 = vmatprep.subr.mxu0 0.0
    %708 = vmatpush1.msra.mxu0 %v689
    %709 = vmatprep.subr.mxu0 0.0
    %710 = vmatpush1.msra.mxu0 %v690
    %711 = vmatprep.subr.mxu0 0.0
    %712 = vmatpush1.msra.mxu0 %v691
    %713 = vmatprep.subr.mxu0 0.0
    %714 = vmatpush1.msra.mxu0 %v692
    %715 = vmatprep.subr.mxu0 0.0
    %716 = vmatpush1.msra.mxu0 %v693
    %717 = vmatprep.subr.mxu0 0.0
    %718 = vmatpush1.msra.mxu0 %v694
    %719 = vmatprep.subr.mxu0 0.0
    %720 = vmatpush1.msra.mxu0 %v695
    %721 = vmatprep.subr.mxu0 0.0
    %722 = vmatpush1.msra.mxu0 %v696
    %723 = vmatprep.subr.mxu0 0.0
    %724 = vmatpush1.msra.mxu0 %v697
    %725 = vmatprep.subr.mxu0 0.0
    %726 = vmatpush1.msra.mxu0 %v698
    %727 = vmatprep.subr.mxu0 0.0
    %728 = vmatpush1.msra.mxu0 %v699
    %729 = vmatprep.subr.mxu0 0.0
    %730 = vmatpush1.msra.mxu0 %v700
    %731 = vmatprep.subr.mxu0 0.0
    %732 = vmatpush1.msra.mxu0 %v701
    %733 = vmatprep.subr.mxu0 0.0
    %734 = vmatpush1.msra.mxu0 %v702
    %735 = vmatprep.subr.mxu0 0.0
    %736 = vmatpush1.msra.mxu0 0.0
    %737 = vmatprep.subr.mxu0 0.0
    %738 = vmatpush1.msra.mxu0 0.0
    %739 = vmatprep.subr.mxu0 0.0
    %740 = vmatpush1.msra.mxu0 0.0
    %741 = vmatprep.subr.mxu0 0.0
    %742 = vmatpush1.msra.mxu0 0.0
    %743 = vmatprep.subr.mxu0 0.0
    %744 = vmatpush1.msra.mxu0 0.0
    %745 = vmatprep.subr.mxu0 0.0
    %746 = vmatpush1.msra.mxu0 0.0
    %747 = vmatprep.subr.mxu0 0.0
    %748 = vmatpush1.msra.mxu0 0.0
    %749 = vmatprep.subr.mxu0 0.0
    %750 = vmatpush1.msra.mxu0 0.0
    %751 = vmatprep.subr.mxu0 0.0
    %752 = vmatpush1.msra.mxu0 0.0
    %753 = vmatprep.subr.mxu0 0.0
    %754 = vmatpush1.msra.mxu0 0.0
    %755 = vmatprep.subr.mxu0 0.0
    %756 = vmatpush1.msra.mxu0 0.0
    %757 = vmatprep.subr.mxu0 0.0
    %758 = vmatpush1.msra.mxu0 0.0
    %759 = vmatprep.subr.mxu0 0.0
    %760 = vmatpush1.msra.mxu0 0.0
    %761 = vmatprep.subr.mxu0 0.0
    %762 = vmatpush1.msra.mxu0 0.0
    %763 = vmatprep.subr.mxu0 0.0
    %764 = vmatpush1.msra.mxu0 0.0
    %765 = vmatprep.subr.mxu0 0.0
    %766 = vmatpush1.msra.mxu0 0.0
    %767 = vmatprep.mubr.f32.mxu0 0.0
    %768 = vmatmul.mubr.f32.gmra.mrb[0].mxu0 %v686
    %v769 = vpop.f32.mrb[0].mxu0
    %v770 = vadd.f32 0.0, %v769
    %v771 = vpop.f32.mrb[0].mxu0
    %772 = vdwg.mxu0
    %s773 = scalar_lea.vmem [#allocation9], 24
    %774 = vst [vmem:[%s773] sm:$0xff] %v770
    %s775 = scalar_lea.vmem [#allocation3], 32
    %v776 = vld [vmem:[%s775] sm:$0xff]
    %v777 = vld [vmem:[#allocation6] sm:$0xff]
    %v778 = vld [vmem:[#allocation6 + $0x8] sm:$0xff]
    %v779 = vld [vmem:[#allocation6 + $0x10] sm:$0xff]
    %v780 = vld [vmem:[#allocation6 + $0x18] sm:$0xff]
    %v781 = vld [vmem:[#allocation6 + $0x20] sm:$0xff]
    %v782 = vld [vmem:[#allocation6 + $0x28] sm:$0xff]
    %v783 = vld [vmem:[#allocation6 + $0x30] sm:$0xff]
    %v784 = vld [vmem:[#allocation6 + $0x38] sm:$0xff]
    %v785 = vld [vmem:[#allocation6 + $0x40] sm:$0xff]
    %v786 = vld [vmem:[#allocation6 + $0x48] sm:$0xff]
    %v787 = vld [vmem:[#allocation6 + $0x50] sm:$0xff]
    %v788 = vld [vmem:[#allocation6 + $0x58] sm:$0xff]
    %v789 = vld [vmem:[#allocation6 + $0x60] sm:$0xff]
    %v790 = vld [vmem:[#allocation6 + $0x68] sm:$0xff]
    %v791 = vld [vmem:[#allocation6 + $0x70] sm:$0xff]
    %v792 = vld [vmem:[#allocation6 + $0x78] sm:$0xff]
    %793 = vmatprep.subr.mxu0 0.0
    %794 = vmatpush1.msra.mxu0 %v777
    %795 = vmatprep.subr.mxu0 0.0
    %796 = vmatpush1.msra.mxu0 %v778
    %797 = vmatprep.subr.mxu0 0.0
    %798 = vmatpush1.msra.mxu0 %v779
    %799 = vmatprep.subr.mxu0 0.0
    %800 = vmatpush1.msra.mxu0 %v780
    %801 = vmatprep.subr.mxu0 0.0
    %802 = vmatpush1.msra.mxu0 %v781
    %803 = vmatprep.subr.mxu0 0.0
    %804 = vmatpush1.msra.mxu0 %v782
    %805 = vmatprep.subr.mxu0 0.0
    %806 = vmatpush1.msra.mxu0 %v783
    %807 = vmatprep.subr.mxu0 0.0
    %808 = vmatpush1.msra.mxu0 %v784
    %809 = vmatprep.subr.mxu0 0.0
    %810 = vmatpush1.msra.mxu0 %v785
    %811 = vmatprep.subr.mxu0 0.0
    %812 = vmatpush1.msra.mxu0 %v786
    %813 = vmatprep.subr.mxu0 0.0
    %814 = vmatpush1.msra.mxu0 %v787
    %815 = vmatprep.subr.mxu0 0.0
    %816 = vmatpush1.msra.mxu0 %v788
    %817 = vmatprep.subr.mxu0 0.0
    %818 = vmatpush1.msra.mxu0 %v789
    %819 = vmatprep.subr.mxu0 0.0
    %820 = vmatpush1.msra.mxu0 %v790
    %821 = vmatprep.subr.mxu0 0.0
    %822 = vmatpush1.msra.mxu0 %v791
    %823 = vmatprep.subr.mxu0 0.0
    %824 = vmatpush1.msra.mxu0 %v792
    %825 = vmatprep.subr.mxu0 0.0
    %826 = vmatpush1.msra.mxu0 0.0
    %827 = vmatprep.subr.mxu0 0.0
    %828 = vmatpush1.msra.mxu0 0.0
    %829 = vmatprep.subr.mxu0 0.0
    %830 = vmatpush1.msra.mxu0 0.0
    %831 = vmatprep.subr.mxu0 0.0
    %832 = vmatpush1.msra.mxu0 0.0
    %833 = vmatprep.subr.mxu0 0.0
    %834 = vmatpush1.msra.mxu0 0.0
    %835 = vmatprep.subr.mxu0 0.0
    %836 = vmatpush1.msra.mxu0 0.0
    %837 = vmatprep.subr.mxu0 0.0
    %838 = vmatpush1.msra.mxu0 0.0
    %839 = vmatprep.subr.mxu0 0.0
    %840 = vmatpush1.msra.mxu0 0.0
    %841 = vmatprep.subr.mxu0 0.0
    %842 = vmatpush1.msra.mxu0 0.0
    %843 = vmatprep.subr.mxu0 0.0
    %844 = vmatpush1.msra.mxu0 0.0
    %845 = vmatprep.subr.mxu0 0.0
    %846 = vmatpush1.msra.mxu0 0.0
    %847 = vmatprep.subr.mxu0 0.0
    %848 = vmatpush1.msra.mxu0 0.0
    %849 = vmatprep.subr.mxu0 0.0
    %850 = vmatpush1.msra.mxu0 0.0
    %851 = vmatprep.subr.mxu0 0.0
    %852 = vmatpush1.msra.mxu0 0.0
    %853 = vmatprep.subr.mxu0 0.0
    %854 = vmatpush1.msra.mxu0 0.0
    %855 = vmatprep.subr.mxu0 0.0
    %856 = vmatpush1.msra.mxu0 0.0
    %857 = vmatprep.mubr.f32.mxu0 0.0
    %858 = vmatmul.mubr.f32.gmra.mrb[0].mxu0 %v686
    %v859 = vpop.f32.mrb[0].mxu0
    %v860 = vadd.f32 0.0, %v859
    %v861 = vpop.f32.mrb[0].mxu0
    %862 = vdwg.mxu0
    %v863 = vadd.f32 %v776, %v860
    %v864 = vtanh.pop %v863
    %v865 = vld [vmem:[#allocation8] sm:$0xff]
    %v866 = vld [vmem:[#allocation8 + $0x8] sm:$0xff]
    %v867 = vld [vmem:[#allocation8 + $0x10] sm:$0xff]
    %v868 = vld [vmem:[#allocation8 + $0x18] sm:$0xff]
    %v869 = vld [vmem:[#allocation8 + $0x20] sm:$0xff]
    %v870 = vld [vmem:[#allocation8 + $0x28] sm:$0xff]
    %v871 = vld [vmem:[#allocation8 + $0x30] sm:$0xff]
    %v872 = vld [vmem:[#allocation8 + $0x38] sm:$0xff]
    %v873 = vld [vmem:[#allocation8 + $0x40] sm:$0xff]
    %v874 = vld [vmem:[#allocation8 + $0x48] sm:$0xff]
    %v875 = vld [vmem:[#allocation8 + $0x50] sm:$0xff]
    %v876 = vld [vmem:[#allocation8 + $0x58] sm:$0xff]
    %v877 = vld [vmem:[#allocation8 + $0x60] sm:$0xff]
    %v878 = vld [vmem:[#allocation8 + $0x68] sm:$0xff]
    %v879 = vld [vmem:[#allocation8 + $0x70] sm:$0xff]
    %v880 = vld [vmem:[#allocation8 + $0x78] sm:$0xff]
    %881 = vmatprep.subr.mxu0 0.0
    %882 = vmatpush1.msra.mxu0 %v865
    %883 = vmatprep.subr.mxu0 0.0
    %884 = vmatpush1.msra.mxu0 %v866
    %885 = vmatprep.subr.mxu0 0.0
    %886 = vmatpush1.msra.mxu0 %v867
    %887 = vmatprep.subr.mxu0 0.0
    %888 = vmatpush1.msra.mxu0 %v868
    %889 = vmatprep.subr.mxu0 0.0
    %890 = vmatpush1.msra.mxu0 %v869
    %891 = vmatprep.subr.mxu0 0.0
    %892 = vmatpush1.msra.mxu0 %v870
    %893 = vmatprep.subr.mxu0 0.0
    %894 = vmatpush1.msra.mxu0 %v871
    %895 = vmatprep.subr.mxu0 0.0
    %896 = vmatpush1.msra.mxu0 %v872
    %897 = vmatprep.subr.mxu0 0.0
    %898 = vmatpush1.msra.mxu0 %v873
    %899 = vmatprep.subr.mxu0 0.0
    %900 = vmatpush1.msra.mxu0 %v874
    %901 = vmatprep.subr.mxu0 0.0
    %902 = vmatpush1.msra.mxu0 %v875
    %903 = vmatprep.subr.mxu0 0.0
    %904 = vmatpush1.msra.mxu0 %v876
    %905 = vmatprep.subr.mxu0 0.0
    %906 = vmatpush1.msra.mxu0 %v877
    %907 = vmatprep.subr.mxu0 0.0
    %908 = vmatpush1.msra.mxu0 %v878
    %909 = vmatprep.subr.mxu0 0.0
    %910 = vmatpush1.msra.mxu0 %v879
    %911 = vmatprep.subr.mxu0 0.0
    %912 = vmatpush1.msra.mxu0 %v880
    %913 = vmatprep.subr.mxu0 0.0
    %914 = vmatpush1.msra.mxu0 0.0
    %915 = vmatprep.subr.mxu0 0.0
    %916 = vmatpush1.msra.mxu0 0.0
    %917 = vmatprep.subr.mxu0 0.0
    %918 = vmatpush1.msra.mxu0 0.0
    %919 = vmatprep.subr.mxu0 0.0
    %920 = vmatpush1.msra.mxu0 0.0
    %921 = vmatprep.subr.mxu0 0.0
    %922 = vmatpush1.msra.mxu0 0.0
    %923 = vmatprep.subr.mxu0 0.0
    %924 = vmatpush1.msra.mxu0 0.0
    %925 = vmatprep.subr.mxu0 0.0
    %926 = vmatpush1.msra.mxu0 0.0
    %927 = vmatprep.subr.mxu0 0.0
    %928 = vmatpush1.msra.mxu0 0.0
    %929 = vmatprep.subr.mxu0 0.0
    %930 = vmatpush1.msra.mxu0 0.0
    %931 = vmatprep.subr.mxu0 0.0
    %932 = vmatpush1.msra.mxu0 0.0
    %933 = vmatprep.subr.mxu0 0.0
    %934 = vmatpush1.msra.mxu0 0.0
    %935 = vmatprep.subr.mxu0 0.0
    %936 = vmatpush1.msra.mxu0 0.0
    %937 = vmatprep.subr.mxu0 0.0
    %938 = vmatpush1.msra.mxu0 0.0
    %939 = vmatprep.subr.mxu0 0.0
    %940 = vmatpush1.msra.mxu0 0.0
    %941 = vmatprep.subr.mxu0 0.0
    %942 = vmatpush1.msra.mxu0 0.0
    %943 = vmatprep.subr.mxu0 0.0
    %944 = vmatpush1.msra.mxu0 0.0
    %945 = vmatprep.mubr.f32.mxu0 0.0
    %946 = vmatmul.mubr.f32.gmra.mrb[0].mxu0 %v864
    %v947 = vpop.f32.mrb[0].mxu0
    %v948 = vadd.f32 0.0, %v947
    %v949 = vpop.f32.mrb[0].mxu0
    %950 = vdwg.mxu0
    %s951 = scalar_lea.vmem [#allocation9], 32
    %952 = vst [vmem:[%s951] sm:$0xff] %v948
    %s953 = scalar_lea.vmem [#allocation3], 40
    %v954 = vld [vmem:[%s953] sm:$0xff]
    %v955 = vld [vmem:[#allocation6] sm:$0xff]
    %v956 = vld [vmem:[#allocation6 + $0x8] sm:$0xff]
    %v957 = vld [vmem:[#allocation6 + $0x10] sm:$0xff]
    %v958 = vld [vmem:[#allocation6 + $0x18] sm:$0xff]
    %v959 = vld [vmem:[#allocation6 + $0x20] sm:$0xff]
    %v960 = vld [vmem:[#allocation6 + $0x28] sm:$0xff]
    %v961 = vld [vmem:[#allocation6 + $0x30] sm:$0xff]
    %v962 = vld [vmem:[#allocation6 + $0x38] sm:$0xff]
    %v963 = vld [vmem:[#allocation6 + $0x40] sm:$0xff]
    %v964 = vld [vmem:[#allocation6 + $0x48] sm:$0xff]
    %v965 = vld [vmem:[#allocation6 + $0x50] sm:$0xff]
    %v966 = vld [vmem:[#allocation6 + $0x58] sm:$0xff]
    %v967 = vld [vmem:[#allocation6 + $0x60] sm:$0xff]
    %v968 = vld [vmem:[#allocation6 + $0x68] sm:$0xff]
    %v969 = vld [vmem:[#allocation6 + $0x70] sm:$0xff]
    %v970 = vld [vmem:[#allocation6 + $0x78] sm:$0xff]
    %971 = vmatprep.subr.mxu0 0.0
    %972 = vmatpush1.msra.mxu0 %v955
    %973 = vmatprep.subr.mxu0 0.0
    %974 = vmatpush1.msra.mxu0 %v956
    %975 = vmatprep.subr.mxu0 0.0
    %976 = vmatpush1.msra.mxu0 %v957
    %977 = vmatprep.subr.mxu0 0.0
    %978 = vmatpush1.msra.mxu0 %v958
    %979 = vmatprep.subr.mxu0 0.0
    %980 = vmatpush1.msra.mxu0 %v959
    %981 = vmatprep.subr.mxu0 0.0
    %982 = vmatpush1.msra.mxu0 %v960
    %983 = vmatprep.subr.mxu0 0.0
    %984 = vmatpush1.msra.mxu0 %v961
    %985 = vmatprep.subr.mxu0 0.0
    %986 = vmatpush1.msra.mxu0 %v962
    %987 = vmatprep.subr.mxu0 0.0
    %988 = vmatpush1.msra.mxu0 %v963
    %989 = vmatprep.subr.mxu0 0.0
    %990 = vmatpush1.msra.mxu0 %v964
    %991 = vmatprep.subr.mxu0 0.0
    %992 = vmatpush1.msra.mxu0 %v965
    %993 = vmatprep.subr.mxu0 0.0
    %994 = vmatpush1.msra.mxu0 %v966
    %995 = vmatprep.subr.mxu0 0.0
    %996 = vmatpush1.msra.mxu0 %v967
    %997 = vmatprep.subr.mxu0 0.0
    %998 = vmatpush1.msra.mxu0 %v968
    %999 = vmatprep.subr.mxu0 0.0
    %1000 = vmatpush1.msra.mxu0 %v969
    %1001 = vmatprep.subr.mxu0 0.0
    %1002 = vmatpush1.msra.mxu0 %v970
    %1003 = vmatprep.subr.mxu0 0.0
    %1004 = vmatpush1.msra.mxu0 0.0
    %1005 = vmatprep.subr.mxu0 0.0
    %1006 = vmatpush1.msra.mxu0 0.0
    %1007 = vmatprep.subr.mxu0 0.0
    %1008 = vmatpush1.msra.mxu0 0.0
    %1009 = vmatprep.subr.mxu0 0.0
    %1010 = vmatpush1.msra.mxu0 0.0
    %1011 = vmatprep.subr.mxu0 0.0
    %1012 = vmatpush1.msra.mxu0 0.0
    %1013 = vmatprep.subr.mxu0 0.0
    %1014 = vmatpush1.msra.mxu0 0.0
    %1015 = vmatprep.subr.mxu0 0.0
    %1016 = vmatpush1.msra.mxu0 0.0
    %1017 = vmatprep.subr.mxu0 0.0
    %1018 = vmatpush1.msra.mxu0 0.0
    %1019 = vmatprep.subr.mxu0 0.0
    %1020 = vmatpush1.msra.mxu0 0.0
    %1021 = vmatprep.subr.mxu0 0.0
    %1022 = vmatpush1.msra.mxu0 0.0
    %1023 = vmatprep.subr.mxu0 0.0
    %1024 = vmatpush1.msra.mxu0 0.0
    %1025 = vmatprep.subr.mxu0 0.0
    %1026 = vmatpush1.msra.mxu0 0.0
    %1027 = vmatprep.subr.mxu0 0.0
    %1028 = vmatpush1.msra.mxu0 0.0
    %1029 = vmatprep.subr.mxu0 0.0
    %1030 = vmatpush1.msra.mxu0 0.0
    %1031 = vmatprep.subr.mxu0 0.0
    %1032 = vmatpush1.msra.mxu0 0.0
    %1033 = vmatprep.subr.mxu0 0.0
    %1034 = vmatpush1.msra.mxu0 0.0
    %1035 = vmatprep.mubr.f32.mxu0 0.0
    %1036 = vmatmul.mubr.f32.gmra.mrb[0].mxu0 %v864
    %v1037 = vpop.f32.mrb[0].mxu0
    %v1038 = vadd.f32 0.0, %v1037
    %v1039 = vpop.f32.mrb[0].mxu0
    %1040 = vdwg.mxu0
    %v1041 = vadd.f32 %v954, %v1038
    %v1042 = vtanh.pop %v1041
    %v1043 = vld [vmem:[#allocation8] sm:$0xff]
    %v1044 = vld [vmem:[#allocation8 + $0x8] sm:$0xff]
    %v1045 = vld [vmem:[#allocation8 + $0x10] sm:$0xff]
    %v1046 = vld [vmem:[#allocation8 + $0x18] sm:$0xff]
    %v1047 = vld [vmem:[#allocation8 + $0x20] sm:$0xff]
    %v1048 = vld [vmem:[#allocation8 + $0x28] sm:$0xff]
    %v1049 = vld [vmem:[#allocation8 + $0x30] sm:$0xff]
    %v1050 = vld [vmem:[#allocation8 + $0x38] sm:$0xff]
    %v1051 = vld [vmem:[#allocation8 + $0x40] sm:$0xff]
    %v1052 = vld [vmem:[#allocation8 + $0x48] sm:$0xff]
    %v1053 = vld [vmem:[#allocation8 + $0x50] sm:$0xff]
    %v1054 = vld [vmem:[#allocation8 + $0x58] sm:$0xff]
    %v1055 = vld [vmem:[#allocation8 + $0x60] sm:$0xff]
    %v1056 = vld [vmem:[#allocation8 + $0x68] sm:$0xff]
    %v1057 = vld [vmem:[#allocation8 + $0x70] sm:$0xff]
    %v1058 = vld [vmem:[#allocation8 + $0x78] sm:$0xff]
    %1059 = vmatprep.subr.mxu0 0.0
    %1060 = vmatpush1.msra.mxu0 %v1043
    %1061 = vmatprep.subr.mxu0 0.0
    %1062 = vmatpush1.msra.mxu0 %v1044
    %1063 = vmatprep.subr.mxu0 0.0
    %1064 = vmatpush1.msra.mxu0 %v1045
    %1065 = vmatprep.subr.mxu0 0.0
    %1066 = vmatpush1.msra.mxu0 %v1046
    %1067 = vmatprep.subr.mxu0 0.0
    %1068 = vmatpush1.msra.mxu0 %v1047
    %1069 = vmatprep.subr.mxu0 0.0
    %1070 = vmatpush1.msra.mxu0 %v1048
    %1071 = vmatprep.subr.mxu0 0.0
    %1072 = vmatpush1.msra.mxu0 %v1049
    %1073 = vmatprep.subr.mxu0 0.0
    %1074 = vmatpush1.msra.mxu0 %v1050
    %1075 = vmatprep.subr.mxu0 0.0
    %1076 = vmatpush1.msra.mxu0 %v1051
    %1077 = vmatprep.subr.mxu0 0.0
    %1078 = vmatpush1.msra.mxu0 %v1052
    %1079 = vmatprep.subr.mxu0 0.0
    %1080 = vmatpush1.msra.mxu0 %v1053
    %1081 = vmatprep.subr.mxu0 0.0
    %1082 = vmatpush1.msra.mxu0 %v1054
    %1083 = vmatprep.subr.mxu0 0.0
    %1084 = vmatpush1.msra.mxu0 %v1055
    %1085 = vmatprep.subr.mxu0 0.0
    %1086 = vmatpush1.msra.mxu0 %v1056
    %1087 = vmatprep.subr.mxu0 0.0
    %1088 = vmatpush1.msra.mxu0 %v1057
    %1089 = vmatprep.subr.mxu0 0.0
    %1090 = vmatpush1.msra.mxu0 %v1058
    %1091 = vmatprep.subr.mxu0 0.0
    %1092 = vmatpush1.msra.mxu0 0.0
    %1093 = vmatprep.subr.mxu0 0.0
    %1094 = vmatpush1.msra.mxu0 0.0
    %1095 = vmatprep.subr.mxu0 0.0
    %1096 = vmatpush1.msra.mxu0 0.0
    %1097 = vmatprep.subr.mxu0 0.0
    %1098 = vmatpush1.msra.mxu0 0.0
    %1099 = vmatprep.subr.mxu0 0.0
    %1100 = vmatpush1.msra.mxu0 0.0
    %1101 = vmatprep.subr.mxu0 0.0
    %1102 = vmatpush1.msra.mxu0 0.0
    %1103 = vmatprep.subr.mxu0 0.0
    %1104 = vmatpush1.msra.mxu0 0.0
    %1105 = vmatprep.subr.mxu0 0.0
    %1106 = vmatpush1.msra.mxu0 0.0
    %1107 = vmatprep.subr.mxu0 0.0
    %1108 = vmatpush1.msra.mxu0 0.0
    %1109 = vmatprep.subr.mxu0 0.0
    %1110 = vmatpush1.msra.mxu0 0.0
    %1111 = vmatprep.subr.mxu0 0.0
    %1112 = vmatpush1.msra.mxu0 0.0
    %1113 = vmatprep.subr.mxu0 0.0
    %1114 = vmatpush1.msra.mxu0 0.0
    %1115 = vmatprep.subr.mxu0 0.0
    %1116 = vmatpush1.msra.mxu0 0.0
    %1117 = vmatprep.subr.mxu0 0.0
    %1118 = vmatpush1.msra.mxu0 0.0
    %1119 = vmatprep.subr.mxu0 0.0
    %1120 = vmatpush1.msra.mxu0 0.0
    %1121 = vmatprep.subr.mxu0 0.0
    %1122 = vmatpush1.msra.mxu0 0.0
    %1123 = vmatprep.mubr.f32.mxu0 0.0
    %1124 = vmatmul.mubr.f32.gmra.mrb[0].mxu0 %v1042
    %v1125 = vpop.f32.mrb[0].mxu0
    %v1126 = vadd.f32 0.0, %v1125
    %v1127 = vpop.f32.mrb[0].mxu0
    %1128 = vdwg.mxu0
    %s1129 = scalar_lea.vmem [#allocation9], 40
    %1130 = vst [vmem:[%s1129] sm:$0xff] %v1126
    %s1131 = scalar_lea.vmem [#allocation3], 48
    %v1132 = vld [vmem:[%s1131] sm:$0xff]
    %v1133 = vld [vmem:[#allocation6] sm:$0xff]
    %v1134 = vld [vmem:[#allocation6 + $0x8] sm:$0xff]
    %v1135 = vld [vmem:[#allocation6 + $0x10] sm:$0xff]
    %v1136 = vld [vmem:[#allocation6 + $0x18] sm:$0xff]
    %v1137 = vld [vmem:[#allocation6 + $0x20] sm:$0xff]
    %v1138 = vld [vmem:[#allocation6 + $0x28] sm:$0xff]
    %v1139 = vld [vmem:[#allocation6 + $0x30] sm:$0xff]
    %v1140 = vld [vmem:[#allocation6 + $0x38] sm:$0xff]
    %v1141 = vld [vmem:[#allocation6 + $0x40] sm:$0xff]
    %v1142 = vld [vmem:[#allocation6 + $0x48] sm:$0xff]
    %v1143 = vld [vmem:[#allocation6 + $0x50] sm:$0xff]
    %v1144 = vld [vmem:[#allocation6 + $0x58] sm:$0xff]
    %v1145 = vld [vmem:[#allocation6 + $0x60] sm:$0xff]
    %v1146 = vld [vmem:[#allocation6 + $0x68] sm:$0xff]
    %v1147 = vld [vmem:[#allocation6 + $0x70] sm:$0xff]
    %v1148 = vld [vmem:[#allocation6 + $0x78] sm:$0xff]
    %1149 = vmatprep.subr.mxu0 0.0
    %1150 = vmatpush1.msra.mxu0 %v1133
    %1151 = vmatprep.subr.mxu0 0.0
    %1152 = vmatpush1.msra.mxu0 %v1134
    %1153 = vmatprep.subr.mxu0 0.0
    %1154 = vmatpush1.msra.mxu0 %v1135
    %1155 = vmatprep.subr.mxu0 0.0
    %1156 = vmatpush1.msra.mxu0 %v1136
    %1157 = vmatprep.subr.mxu0 0.0
    %1158 = vmatpush1.msra.mxu0 %v1137
    %1159 = vmatprep.subr.mxu0 0.0
    %1160 = vmatpush1.msra.mxu0 %v1138
    %1161 = vmatprep.subr.mxu0 0.0
    %1162 = vmatpush1.msra.mxu0 %v1139
    %1163 = vmatprep.subr.mxu0 0.0
    %1164 = vmatpush1.msra.mxu0 %v1140
    %1165 = vmatprep.subr.mxu0 0.0
    %1166 = vmatpush1.msra.mxu0 %v1141
    %1167 = vmatprep.subr.mxu0 0.0
    %1168 = vmatpush1.msra.mxu0 %v1142
    %1169 = vmatprep.subr.mxu0 0.0
    %1170 = vmatpush1.msra.mxu0 %v1143
    %1171 = vmatprep.subr.mxu0 0.0
    %1172 = vmatpush1.msra.mxu0 %v1144
    %1173 = vmatprep.subr.mxu0 0.0
    %1174 = vmatpush1.msra.mxu0 %v1145
    %1175 = vmatprep.subr.mxu0 0.0
    %1176 = vmatpush1.msra.mxu0 %v1146
    %1177 = vmatprep.subr.mxu0 0.0
    %1178 = vmatpush1.msra.mxu0 %v1147
    %1179 = vmatprep.subr.mxu0 0.0
    %1180 = vmatpush1.msra.mxu0 %v1148
    %1181 = vmatprep.subr.mxu0 0.0
    %1182 = vmatpush1.msra.mxu0 0.0
    %1183 = vmatprep.subr.mxu0 0.0
    %1184 = vmatpush1.msra.mxu0 0.0
    %1185 = vmatprep.subr.mxu0 0.0
    %1186 = vmatpush1.msra.mxu0 0.0
    %1187 = vmatprep.subr.mxu0 0.0
    %1188 = vmatpush1.msra.mxu0 0.0
    %1189 = vmatprep.subr.mxu0 0.0
    %1190 = vmatpush1.msra.mxu0 0.0
    %1191 = vmatprep.subr.mxu0 0.0
    %1192 = vmatpush1.msra.mxu0 0.0
    %1193 = vmatprep.subr.mxu0 0.0
    %1194 = vmatpush1.msra.mxu0 0.0
    %1195 = vmatprep.subr.mxu0 0.0
    %1196 = vmatpush1.msra.mxu0 0.0
    %1197 = vmatprep.subr.mxu0 0.0
    %1198 = vmatpush1.msra.mxu0 0.0
    %1199 = vmatprep.subr.mxu0 0.0
    %1200 = vmatpush1.msra.mxu0 0.0
    %1201 = vmatprep.subr.mxu0 0.0
    %1202 = vmatpush1.msra.mxu0 0.0
    %1203 = vmatprep.subr.mxu0 0.0
    %1204 = vmatpush1.msra.mxu0 0.0
    %1205 = vmatprep.subr.mxu0 0.0
    %1206 = vmatpush1.msra.mxu0 0.0
    %1207 = vmatprep.subr.mxu0 0.0
    %1208 = vmatpush1.msra.mxu0 0.0
    %1209 = vmatprep.subr.mxu0 0.0
    %1210 = vmatpush1.msra.mxu0 0.0
    %1211 = vmatprep.subr.mxu0 0.0
    %1212 = vmatpush1.msra.mxu0 0.0
    %1213 = vmatprep.mubr.f32.mxu0 0.0
    %1214 = vmatmul.mubr.f32.gmra.mrb[0].mxu0 %v1042
    %v1215 = vpop.f32.mrb[0].mxu0
    %v1216 = vadd.f32 0.0, %v1215
    %v1217 = vpop.f32.mrb[0].mxu0
    %1218 = vdwg.mxu0
    %v1219 = vadd.f32 %v1132, %v1216
    %v1220 = vtanh.pop %v1219
    %v1221 = vld [vmem:[#allocation8] sm:$0xff]
    %v1222 = vld [vmem:[#allocation8 + $0x8] sm:$0xff]
    %v1223 = vld [vmem:[#allocation8 + $0x10] sm:$0xff]
    %v1224 = vld [vmem:[#allocation8 + $0x18] sm:$0xff]
    %v1225 = vld [vmem:[#allocation8 + $0x20] sm:$0xff]
    %v1226 = vld [vmem:[#allocation8 + $0x28] sm:$0xff]
    %v1227 = vld [vmem:[#allocation8 + $0x30] sm:$0xff]
    %v1228 = vld [vmem:[#allocation8 + $0x38] sm:$0xff]
    %v1229 = vld [vmem:[#allocation8 + $0x40] sm:$0xff]
    %v1230 = vld [vmem:[#allocation8 + $0x48] sm:$0xff]
    %v1231 = vld [vmem:[#allocation8 + $0x50] sm:$0xff]
    %v1232 = vld [vmem:[#allocation8 + $0x58] sm:$0xff]
    %v1233 = vld [vmem:[#allocation8 + $0x60] sm:$0xff]
    %v1234 = vld [vmem:[#allocation8 + $0x68] sm:$0xff]
    %v1235 = vld [vmem:[#allocation8 + $0x70] sm:$0xff]
    %v1236 = vld [vmem:[#allocation8 + $0x78] sm:$0xff]
    %1237 = vmatprep.subr.mxu0 0.0
    %1238 = vmatpush1.msra.mxu0 %v1221
    %1239 = vmatprep.subr.mxu0 0.0
    %1240 = vmatpush1.msra.mxu0 %v1222
    %1241 = vmatprep.subr.mxu0 0.0
    %1242 = vmatpush1.msra.mxu0 %v1223
    %1243 = vmatprep.subr.mxu0 0.0
    %1244 = vmatpush1.msra.mxu0 %v1224
    %1245 = vmatprep.subr.mxu0 0.0
    %1246 = vmatpush1.msra.mxu0 %v1225
    %1247 = vmatprep.subr.mxu0 0.0
    %1248 = vmatpush1.msra.mxu0 %v1226
    %1249 = vmatprep.subr.mxu0 0.0
    %1250 = vmatpush1.msra.mxu0 %v1227
    %1251 = vmatprep.subr.mxu0 0.0
    %1252 = vmatpush1.msra.mxu0 %v1228
    %1253 = vmatprep.subr.mxu0 0.0
    %1254 = vmatpush1.msra.mxu0 %v1229
    %1255 = vmatprep.subr.mxu0 0.0
    %1256 = vmatpush1.msra.mxu0 %v1230
    %1257 = vmatprep.subr.mxu0 0.0
    %1258 = vmatpush1.msra.mxu0 %v1231
    %1259 = vmatprep.subr.mxu0 0.0
    %1260 = vmatpush1.msra.mxu0 %v1232
    %1261 = vmatprep.subr.mxu0 0.0
    %1262 = vmatpush1.msra.mxu0 %v1233
    %1263 = vmatprep.subr.mxu0 0.0
    %1264 = vmatpush1.msra.mxu0 %v1234
    %1265 = vmatprep.subr.mxu0 0.0
    %1266 = vmatpush1.msra.mxu0 %v1235
    %1267 = vmatprep.subr.mxu0 0.0
    %1268 = vmatpush1.msra.mxu0 %v1236
    %1269 = vmatprep.subr.mxu0 0.0
    %1270 = vmatpush1.msra.mxu0 0.0
    %1271 = vmatprep.subr.mxu0 0.0
    %1272 = vmatpush1.msra.mxu0 0.0
    %1273 = vmatprep.subr.mxu0 0.0
    %1274 = vmatpush1.msra.mxu0 0.0
    %1275 = vmatprep.subr.mxu0 0.0
    %1276 = vmatpush1.msra.mxu0 0.0
    %1277 = vmatprep.subr.mxu0 0.0
    %1278 = vmatpush1.msra.mxu0 0.0
    %1279 = vmatprep.subr.mxu0 0.0
    %1280 = vmatpush1.msra.mxu0 0.0
    %1281 = vmatprep.subr.mxu0 0.0
    %1282 = vmatpush1.msra.mxu0 0.0
    %1283 = vmatprep.subr.mxu0 0.0
    %1284 = vmatpush1.msra.mxu0 0.0
    %1285 = vmatprep.subr.mxu0 0.0
    %1286 = vmatpush1.msra.mxu0 0.0
    %1287 = vmatprep.subr.mxu0 0.0
    %1288 = vmatpush1.msra.mxu0 0.0
    %1289 = vmatprep.subr.mxu0 0.0
    %1290 = vmatpush1.msra.mxu0 0.0
    %1291 = vmatprep.subr.mxu0 0.0
    %1292 = vmatpush1.msra.mxu0 0.0
    %1293 = vmatprep.subr.mxu0 0.0
    %1294 = vmatpush1.msra.mxu0 0.0
    %1295 = vmatprep.subr.mxu0 0.0
    %1296 = vmatpush1.msra.mxu0 0.0
    %1297 = vmatprep.subr.mxu0 0.0
    %1298 = vmatpush1.msra.mxu0 0.0
    %1299 = vmatprep.subr.mxu0 0.0
    %1300 = vmatpush1.msra.mxu0 0.0
    %1301 = vmatprep.mubr.f32.mxu0 0.0
    %1302 = vmatmul.mubr.f32.gmra.mrb[0].mxu0 %v1220
    %v1303 = vpop.f32.mrb[0].mxu0
    %v1304 = vadd.f32 0.0, %v1303
    %v1305 = vpop.f32.mrb[0].mxu0
    %1306 = vdwg.mxu0
    %s1307 = scalar_lea.vmem [#allocation9], 48
    %1308 = vst [vmem:[%s1307] sm:$0xff] %v1304
    %s1309 = scalar_lea.vmem [#allocation3], 56
    %v1310 = vld [vmem:[%s1309] sm:$0xff]
    %v1311 = vld [vmem:[#allocation6] sm:$0xff]
    %v1312 = vld [vmem:[#allocation6 + $0x8] sm:$0xff]
    %v1313 = vld [vmem:[#allocation6 + $0x10] sm:$0xff]
    %v1314 = vld [vmem:[#allocation6 + $0x18] sm:$0xff]
    %v1315 = vld [vmem:[#allocation6 + $0x20] sm:$0xff]
    %v1316 = vld [vmem:[#allocation6 + $0x28] sm:$0xff]
    %v1317 = vld [vmem:[#allocation6 + $0x30] sm:$0xff]
    %v1318 = vld [vmem:[#allocation6 + $0x38] sm:$0xff]
    %v1319 = vld [vmem:[#allocation6 + $0x40] sm:$0xff]
    %v1320 = vld [vmem:[#allocation6 + $0x48] sm:$0xff]
    %v1321 = vld [vmem:[#allocation6 + $0x50] sm:$0xff]
    %v1322 = vld [vmem:[#allocation6 + $0x58] sm:$0xff]
    %v1323 = vld [vmem:[#allocation6 + $0x60] sm:$0xff]
    %v1324 = vld [vmem:[#allocation6 + $0x68] sm:$0xff]
    %v1325 = vld [vmem:[#allocation6 + $0x70] sm:$0xff]
    %v1326 = vld [vmem:[#allocation6 + $0x78] sm:$0xff]
    %1327 = vmatprep.subr.mxu0 0.0
    %1328 = vmatpush1.msra.mxu0 %v1311
    %1329 = vmatprep.subr.mxu0 0.0
    %1330 = vmatpush1.msra.mxu0 %v1312
    %1331 = vmatprep.subr.mxu0 0.0
    %1332 = vmatpush1.msra.mxu0 %v1313
    %1333 = vmatprep.subr.mxu0 0.0
    %1334 = vmatpush1.msra.mxu0 %v1314
    %1335 = vmatprep.subr.mxu0 0.0
    %1336 = vmatpush1.msra.mxu0 %v1315
    %1337 = vmatprep.subr.mxu0 0.0
    %1338 = vmatpush1.msra.mxu0 %v1316
    %1339 = vmatprep.subr.mxu0 0.0
    %1340 = vmatpush1.msra.mxu0 %v1317
    %1341 = vmatprep.subr.mxu0 0.0
    %1342 = vmatpush1.msra.mxu0 %v1318
    %1343 = vmatprep.subr.mxu0 0.0
    %1344 = vmatpush1.msra.mxu0 %v1319
    %1345 = vmatprep.subr.mxu0 0.0
    %1346 = vmatpush1.msra.mxu0 %v1320
    %1347 = vmatprep.subr.mxu0 0.0
    %1348 = vmatpush1.msra.mxu0 %v1321
    %1349 = vmatprep.subr.mxu0 0.0
    %1350 = vmatpush1.msra.mxu0 %v1322
    %1351 = vmatprep.subr.mxu0 0.0
    %1352 = vmatpush1.msra.mxu0 %v1323
    %1353 = vmatprep.subr.mxu0 0.0
    %1354 = vmatpush1.msra.mxu0 %v1324
    %1355 = vmatprep.subr.mxu0 0.0
    %1356 = vmatpush1.msra.mxu0 %v1325
    %1357 = vmatprep.subr.mxu0 0.0
    %1358 = vmatpush1.msra.mxu0 %v1326
    %1359 = vmatprep.subr.mxu0 0.0
    %1360 = vmatpush1.msra.mxu0 0.0
    %1361 = vmatprep.subr.mxu0 0.0
    %1362 = vmatpush1.msra.mxu0 0.0
    %1363 = vmatprep.subr.mxu0 0.0
    %1364 = vmatpush1.msra.mxu0 0.0
    %1365 = vmatprep.subr.mxu0 0.0
    %1366 = vmatpush1.msra.mxu0 0.0
    %1367 = vmatprep.subr.mxu0 0.0
    %1368 = vmatpush1.msra.mxu0 0.0
    %1369 = vmatprep.subr.mxu0 0.0
    %1370 = vmatpush1.msra.mxu0 0.0
    %1371 = vmatprep.subr.mxu0 0.0
    %1372 = vmatpush1.msra.mxu0 0.0
    %1373 = vmatprep.subr.mxu0 0.0
    %1374 = vmatpush1.msra.mxu0 0.0
    %1375 = vmatprep.subr.mxu0 0.0
    %1376 = vmatpush1.msra.mxu0 0.0
    %1377 = vmatprep.subr.mxu0 0.0
    %1378 = vmatpush1.msra.mxu0 0.0
    %1379 = vmatprep.subr.mxu0 0.0
    %1380 = vmatpush1.msra.mxu0 0.0
    %1381 = vmatprep.subr.mxu0 0.0
    %1382 = vmatpush1.msra.mxu0 0.0
    %1383 = vmatprep.subr.mxu0 0.0
    %1384 = vmatpush1.msra.mxu0 0.0
    %1385 = vmatprep.subr.mxu0 0.0
    %1386 = vmatpush1.msra.mxu0 0.0
    %1387 = vmatprep.subr.mxu0 0.0
    %1388 = vmatpush1.msra.mxu0 0.0
    %1389 = vmatprep.subr.mxu0 0.0
    %1390 = vmatpush1.msra.mxu0 0.0
    %1391 = vmatprep.mubr.f32.mxu0 0.0
    %1392 = vmatmul.mubr.f32.gmra.mrb[0].mxu0 %v1220
    %v1393 = vpop.f32.mrb[0].mxu0
    %v1394 = vadd.f32 0.0, %v1393
    %v1395 = vpop.f32.mrb[0].mxu0
    %1396 = vdwg.mxu0
    %v1397 = vadd.f32 %v1310, %v1394
    %v1398 = vtanh.pop %v1397
    %v1399 = vld [vmem:[#allocation8] sm:$0xff]
    %v1400 = vld [vmem:[#allocation8 + $0x8] sm:$0xff]
    %v1401 = vld [vmem:[#allocation8 + $0x10] sm:$0xff]
    %v1402 = vld [vmem:[#allocation8 + $0x18] sm:$0xff]
    %v1403 = vld [vmem:[#allocation8 + $0x20] sm:$0xff]
    %v1404 = vld [vmem:[#allocation8 + $0x28] sm:$0xff]
    %v1405 = vld [vmem:[#allocation8 + $0x30] sm:$0xff]
    %v1406 = vld [vmem:[#allocation8 + $0x38] sm:$0xff]
    %v1407 = vld [vmem:[#allocation8 + $0x40] sm:$0xff]
    %v1408 = vld [vmem:[#allocation8 + $0x48] sm:$0xff]
    %v1409 = vld [vmem:[#allocation8 + $0x50] sm:$0xff]
    %v1410 = vld [vmem:[#allocation8 + $0x58] sm:$0xff]
    %v1411 = vld [vmem:[#allocation8 + $0x60] sm:$0xff]
    %v1412 = vld [vmem:[#allocation8 + $0x68] sm:$0xff]
    %v1413 = vld [vmem:[#allocation8 + $0x70] sm:$0xff]
    %v1414 = vld [vmem:[#allocation8 + $0x78] sm:$0xff]
    %1415 = vmatprep.subr.mxu0 0.0
    %1416 = vmatpush1.msra.mxu0 %v1399
    %1417 = vmatprep.subr.mxu0 0.0
    %1418 = vmatpush1.msra.mxu0 %v1400
    %1419 = vmatprep.subr.mxu0 0.0
    %1420 = vmatpush1.msra.mxu0 %v1401
    %1421 = vmatprep.subr.mxu0 0.0
    %1422 = vmatpush1.msra.mxu0 %v1402
    %1423 = vmatprep.subr.mxu0 0.0
    %1424 = vmatpush1.msra.mxu0 %v1403
    %1425 = vmatprep.subr.mxu0 0.0
    %1426 = vmatpush1.msra.mxu0 %v1404
    %1427 = vmatprep.subr.mxu0 0.0
    %1428 = vmatpush1.msra.mxu0 %v1405
    %1429 = vmatprep.subr.mxu0 0.0
    %1430 = vmatpush1.msra.mxu0 %v1406
    %1431 = vmatprep.subr.mxu0 0.0
    %1432 = vmatpush1.msra.mxu0 %v1407
    %1433 = vmatprep.subr.mxu0 0.0
    %1434 = vmatpush1.msra.mxu0 %v1408
    %1435 = vmatprep.subr.mxu0 0.0
    %1436 = vmatpush1.msra.mxu0 %v1409
    %1437 = vmatprep.subr.mxu0 0.0
    %1438 = vmatpush1.msra.mxu0 %v1410
    %1439 = vmatprep.subr.mxu0 0.0
    %1440 = vmatpush1.msra.mxu0 %v1411
    %1441 = vmatprep.subr.mxu0 0.0
    %1442 = vmatpush1.msra.mxu0 %v1412
    %1443 = vmatprep.subr.mxu0 0.0
    %1444 = vmatpush1.msra.mxu0 %v1413
    %1445 = vmatprep.subr.mxu0 0.0
    %1446 = vmatpush1.msra.mxu0 %v1414
    %1447 = vmatprep.subr.mxu0 0.0
    %1448 = vmatpush1.msra.mxu0 0.0
    %1449 = vmatprep.subr.mxu0 0.0
    %1450 = vmatpush1.msra.mxu0 0.0
    %1451 = vmatprep.subr.mxu0 0.0
    %1452 = vmatpush1.msra.mxu0 0.0
    %1453 = vmatprep.subr.mxu0 0.0
    %1454 = vmatpush1.msra.mxu0 0.0
    %1455 = vmatprep.subr.mxu0 0.0
    %1456 = vmatpush1.msra.mxu0 0.0
    %1457 = vmatprep.subr.mxu0 0.0
    %1458 = vmatpush1.msra.mxu0 0.0
    %1459 = vmatprep.subr.mxu0 0.0
    %1460 = vmatpush1.msra.mxu0 0.0
    %1461 = vmatprep.subr.mxu0 0.0
    %1462 = vmatpush1.msra.mxu0 0.0
    %1463 = vmatprep.subr.mxu0 0.0
    %1464 = vmatpush1.msra.mxu0 0.0
    %1465 = vmatprep.subr.mxu0 0.0
    %1466 = vmatpush1.msra.mxu0 0.0
    %1467 = vmatprep.subr.mxu0 0.0
    %1468 = vmatpush1.msra.mxu0 0.0
    %1469 = vmatprep.subr.mxu0 0.0
    %1470 = vmatpush1.msra.mxu0 0.0
    %1471 = vmatprep.subr.mxu0 0.0
    %1472 = vmatpush1.msra.mxu0 0.0
    %1473 = vmatprep.subr.mxu0 0.0
    %1474 = vmatpush1.msra.mxu0 0.0
    %1475 = vmatprep.subr.mxu0 0.0
    %1476 = vmatpush1.msra.mxu0 0.0
    %1477 = vmatprep.subr.mxu0 0.0
    %1478 = vmatpush1.msra.mxu0 0.0
    %1479 = vmatprep.mubr.f32.mxu0 0.0
    %1480 = vmatmul.mubr.f32.gmra.mrb[0].mxu0 %v1398
    %v1481 = vpop.f32.mrb[0].mxu0
    %v1482 = vadd.f32 0.0, %v1481
    %v1483 = vpop.f32.mrb[0].mxu0
    %1484 = vdwg.mxu0
    %s1485 = scalar_lea.vmem [#allocation9], 56
    %1486 = vst [vmem:[%s1485] sm:$0xff] %v1482
    %1487 = vst [vmem:[#allocation2] sm:$0xff] %v1398
    // Predicated region
    $region30: #{tpu_custom_call.1} parent=1 // pred_check
      %p1488 = pneg %p59
    $region31: #{tpu_custom_call.1} parent=1 // pred_check_branch
      %1490 = sbr.rel (%p1488) target = $region33
    $region32: #{tpu_custom_call.1} parent=1 // pred_region
      %v1491 = vld [vmem:[#allocation2] sm:$0xff]
      %1492 = vst [vmem:[#allocation10] sm:$0xff] %v1491
    $region33: #{tpu_custom_call.1} parent=1 // pred_fallthru
      _
    // Predicated region
    $region34: #{tpu_custom_call.1} parent=1 // pred_check
      _
    $region35: #{tpu_custom_call.1} parent=1 // pred_check_branch
      %1494 = sbr.rel (0) target = $region37
    $region36: #{tpu_custom_call.1} parent=1 // pred_region
      %s1496 = ssub.s32 1024, 1024
      %1497 = vsyncadd [#allocation5], %s1496
      %s1498 = sshll.u32 [#allocation9], 4
      %s1499 = int_to_ptr.vmem [resolvable:$true] %s1498
      %1504 = dma.vmem_to_hbm [thread:$0]  %s1499, 1024, %s3, [#allocation5], 128, 128, 8
    $region37: #{tpu_custom_call.1} parent=1 // pred_fallthru
      _
    // Predicated region
    $region38: #{tpu_custom_call.1} parent=1 // pred_check
      _
    $region39: #{tpu_custom_call.1} parent=1 // pred_check_branch
      %1506 = sbr.rel (0) target = $region41
    $region40: #{tpu_custom_call.1} parent=1 // pred_region
      %s1508 = ssub.s32 128, 128
      %1509 = vsyncadd [#allocation11], %s1508
      %s1511 = sshll.u32 [#allocation10], 4
      %s1512 = int_to_ptr.vmem [resolvable:$true] %s1511
      %1514 = dma.vmem_to_hbm [thread:$0]  %s1512, 128, %s4, [#allocation11]
    $region41: #{tpu_custom_call.1} parent=1 // pred_fallthru
      _
    // Predicated region
    $region42: #{tpu_custom_call.1} parent=1 // pred_check
      _
    $region43: #{tpu_custom_call.1} parent=1 // pred_check_branch
      %1516 = sbr.rel (0) target = $region45
    $region44: #{tpu_custom_call.1} parent=1 // pred_region
      %1517 = dma.done [#allocation5], 1024
    $region45: #{tpu_custom_call.1} parent=1 // pred_fallthru
      _
    // Predicated region
    $region46: #{tpu_custom_call.1} parent=1 // pred_check
      _
    $region47: #{tpu_custom_call.1} parent=1 // pred_check_branch
      %1519 = sbr.rel (0) target = $region49
    $region48: #{tpu_custom_call.1} parent=1 // pred_region
      %1520 = dma.done [#allocation11], 128
    $region49: #{tpu_custom_call.1} parent=1 // pred_fallthru
      _
    %1521 = vsyncpa [#allocation4], 1
    %1522 = vsyncpa [#allocation7], 1
    %1523 = vsyncpa [#allocation5], 1
    %1524 = vsyncpa [#allocation11], 1

</llo_original>
